<compile_context>
chip_gen: v7x
topology: tpu7x:2x2x1
jax: 0.10.0
libtpu: 0.0.40
codegen_flags: <defaults>
</compile_context>

<pallas_src>
import functools

import jax
import jax.numpy as jnp
from jax import lax
from jax.experimental import pallas as pl
from jax.experimental.pallas import tpu as pltpu

HIDDEN = 256
N_LAYERS = 5
SUBLANE = 8


def _round_up(n, m):
    return ((n + m - 1) // m) * m


def _lo_net_kernel(x_ref, w1, b1, w2, b2, w3, b3, w4, b4, w5t, b5, o_ref):
    """o^T = ((((x W1 + b1) W2 + b2) W3 + b3) W4 + b4) W5 + b5 (no activations).

    Output is produced transposed: (out_pad8, tile_b) with batch on the
    128-wide lane axis, so stores are lane-dense.
    """
    tile_b, in_sz = x_ref.shape

    # ---- Layer 1 on the VPU -------------------------------------------------
    # K == input_size (e.g. 4) is tiny: a handful of broadcast FMAs in f32 is
    # cheaper and more robust than a zero-padded K=128/256 MXU pass, and it
    # lets x stay completely unpadded in HBM.
    x = x_ref[...].astype(jnp.float32)            # (tile_b, in_sz)
    w1v = w1[...]                                 # (in_sz, HIDDEN) f32 (tiny)
    h = x[:, 0:1] * w1v[0:1, :] + b1[...]         # (tile_b, HIDDEN) f32
    for j in range(1, in_sz):                     # static unroll, in_sz small
        h = h + x[:, j:j + 1] * w1v[j:j + 1, :]

    # ---- Layers 2-4 on the MXU (bf16 operands, f32 accumulation) -----------
    for w_ref, b_ref in ((w2, b2), (w3, b3), (w4, b4)):
        h = jnp.dot(h.astype(jnp.bfloat16), w_ref[...],
                    preferred_element_type=jnp.float32) + b_ref[...]

    # ---- Layer 5, computed transposed: W5^T contracted with h on K=256 -----
    # lhs (out_pad8, 256) bf16, rhs (tile_b, 256) bf16 -> (out_pad8, tile_b).
    o = lax.dot_general(
        w5t[...], h.astype(jnp.bfloat16),
        dimension_numbers=(((1,), (1,)), ((), ())),
        preferred_element_type=jnp.float32) + b5[...]
    o_ref[...] = o.astype(o_ref.dtype)


def prepare_params(params, input_size, output_size, weight_dtype=jnp.bfloat16):
    """Cast/pad/transpose the 5 (W_(in,out), b_(out,)) pairs ONCE, outside the
    jitted forward, so weight prep never shows up in per-call HBM traffic.

      layer 1   : W  (input_size, 256) f32,  b (1, 256) f32     (VPU layer)
      layers 2-4: W  (256, 256)        bf16, b (1, 256) f32     (MXU layers)
      layer 5   : W^T (out_pad8, 256)  bf16, b (out_pad8, 1) f32 (transposed out)
    """
    del input_size  # layer-1 weight is kept unpadded
    out_pad = _round_up(max(output_size, 1), SUBLANE)
    (w1, b1), (w2, b2), (w3, b3), (w4, b4), (w5, b5) = params

    def _w(w):
        return w.astype(weight_dtype)

    def _b(b):
        return b.astype(jnp.float32)[None, :]

    w5t = jnp.zeros((out_pad, HIDDEN), weight_dtype)
    w5t = w5t.at[:output_size, :].set(w5.T.astype(weight_dtype))
    b5c = jnp.zeros((out_pad, 1), jnp.float32)
    b5c = b5c.at[:output_size, 0].set(b5.astype(jnp.float32))

    return (w1.astype(jnp.float32), _b(b1),
            _w(w2), _b(b2), _w(w3), _b(b3), _w(w4), _b(b4),
            w5t, b5c)


def lo_net_forward(x, padded_params, *, output_size, tile_b=512):
    """x: (batch, input_size) float.  padded_params from prepare_params.

    Returns (batch, output_size) float32.
    """
    batch, input_size = x.shape
    out_pad = padded_params[-2].shape[0]

    # 512-row tiles by default (256-multiple for v6e/v7x MXU occupancy,
    # 128-multiple for v5e), clamped so small batches run one snug tile.
    tile_b = min(tile_b, _round_up(max(batch, 1), 256))
    batch_pad = _round_up(max(batch, 1), tile_b)

    # Unpadded-lane bf16 input: ~8 bytes/row of HBM traffic instead of a
    # 128-lane f32 pad (512 bytes/row) plus a separate XLA pad copy.
    x_p = x.astype(jnp.bfloat16)
    if batch_pad != batch:
        x_p = jnp.pad(x_p, ((0, batch_pad - batch), (0, 0)))

    grid = (batch_pad // tile_b,)

    # Weights/biases: grid-invariant whole-array VMEM residents (~0.5 MiB),
    # not double-buffered per step.  Activations stream through the pipeline.
    vmem_resident = pl.BlockSpec(memory_space=pltpu.MemorySpace.VMEM)
    in_specs = [pl.BlockSpec((tile_b, input_size), lambda i: (i, 0))]
    in_specs += [vmem_resident] * (2 * N_LAYERS)

    flops = 2 * batch_pad * (input_size * HIDDEN
                             + (N_LAYERS - 2) * HIDDEN * HIDDEN
                             + HIDDEN * out_pad)
    bytes_params = sum(int(p.size) * int(p.dtype.itemsize) for p in padded_params)
    bytes_accessed = (bytes_params
                      + 2 * batch_pad * input_size      # bf16 x (unpadded)
                      + 4 * batch_pad * out_pad)        # f32 transposed output

    out_t = pl.pallas_call(
        _lo_net_kernel,
        out_shape=jax.ShapeDtypeStruct((out_pad, batch_pad), jnp.float32),
        grid_spec=pltpu.PrefetchScalarGridSpec(
            num_scalar_prefetch=0,
            grid=grid,
            in_specs=in_specs,
            out_specs=pl.BlockSpec((out_pad, tile_b), lambda i: (0, i)),
        ),
        compiler_params=pltpu.CompilerParams(
            dimension_semantics=("parallel",)),
        cost_estimate=pl.CostEstimate(
            flops=flops, transcendentals=0, bytes_accessed=bytes_accessed),
    )(x_p, *padded_params)

    # Un-transpose and strip padding (only <=8 rows x batch_pad, tiny).
    return out_t[:output_size, :batch].T


def init_params(key, input_size, output_size):
    """nn.Linear default init: U(-1/sqrt(in), 1/sqrt(in)); W stored as (in, out)."""
    dims = [input_size, HIDDEN, HIDDEN, HIDDEN, HIDDEN, output_size]
    params = []
    for li in range(N_LAYERS):
        din, dout = dims[li], dims[li + 1]
        key, kw, kb = jax.random.split(key, 3)
        bound = 1.0 / jnp.sqrt(float(din))
        w = jax.random.uniform(kw, (din, dout), jnp.float32, -bound, bound)
        b = jax.random.uniform(kb, (dout,), jnp.float32, -bound, bound)
        params.append((w, b))
    return params


def lo_net_reference(x, params):
    h = x
    for w, b in params:
        h = h @ w + b
    return h


if __name__ == "__main__":
    input_size = 4     # q (joint positions) for the DeLaN lo(q) term
    output_size = 3    # off-diagonal entries of L(q)
    batch = 32         # small demo batch; tile_b is clamped to 256 for it

    key = jax.random.PRNGKey(0)
    key, kx = jax.random.split(key)
    x = jax.random.normal(kx, (batch, input_size), jnp.float32)
    params = init_params(key, input_size, output_size)

    # Pad / cast / transpose the weights once, outside the per-call forward.
    padded_params = prepare_params(params, input_size, output_size)

    fwd = jax.jit(functools.partial(lo_net_forward, output_size=output_size))
    out = fwd(x, padded_params)
    jax.block_until_ready(out)

    ref = lo_net_reference(x, params)
    assert out.shape == (batch, output_size)
    # bf16 weights/activations with f32 accumulation -> loose-ish tolerance.
    assert jnp.allclose(out, ref, atol=2e-2, rtol=2e-2), "mismatch vs JAX reference"

    print("KERNEL_OK")
</pallas_src>

<mosaic_0001>
module attributes {stable_mosaic.version = 11 : i64} {
  func.func @_lo_net_kernel(%arg0: i32, %arg1: memref<256x4xbf16, #tpu.memory_space<vmem>>, %arg2: memref<4x256xf32, #tpu.memory_space<vmem>>, %arg3: memref<1x256xf32, #tpu.memory_space<vmem>>, %arg4: memref<256x256xbf16, #tpu.memory_space<vmem>>, %arg5: memref<1x256xf32, #tpu.memory_space<vmem>>, %arg6: memref<256x256xbf16, #tpu.memory_space<vmem>>, %arg7: memref<1x256xf32, #tpu.memory_space<vmem>>, %arg8: memref<256x256xbf16, #tpu.memory_space<vmem>>, %arg9: memref<1x256xf32, #tpu.memory_space<vmem>>, %arg10: memref<8x256xbf16, #tpu.memory_space<vmem>>, %arg11: memref<8x1xf32, #tpu.memory_space<vmem>>, %arg12: memref<8x256xf32, #tpu.memory_space<vmem>>) attributes {dimension_semantics = [#tpu.dimension_semantics<parallel>], iteration_bounds = array<i64: 1>, scalar_prefetch = 0 : i64, scratch_operands = 0 : i64, tpu.core_type = #tpu.core_type<tc>, window_params = [{transform_indices = @transform_0, window_bounds = array<i64: 256, 4>}, {pipeline_mode = #tpu.pipeline_mode<synchronous>, transform_indices = @transform_1, window_bounds = array<i64: 4, 256>}, {pipeline_mode = #tpu.pipeline_mode<synchronous>, transform_indices = @transform_2, window_bounds = array<i64: 1, 256>}, {pipeline_mode = #tpu.pipeline_mode<synchronous>, transform_indices = @transform_3, window_bounds = array<i64: 256, 256>}, {pipeline_mode = #tpu.pipeline_mode<synchronous>, transform_indices = @transform_4, window_bounds = array<i64: 1, 256>}, {pipeline_mode = #tpu.pipeline_mode<synchronous>, transform_indices = @transform_5, window_bounds = array<i64: 256, 256>}, {pipeline_mode = #tpu.pipeline_mode<synchronous>, transform_indices = @transform_6, window_bounds = array<i64: 1, 256>}, {pipeline_mode = #tpu.pipeline_mode<synchronous>, transform_indices = @transform_7, window_bounds = array<i64: 256, 256>}, {pipeline_mode = #tpu.pipeline_mode<synchronous>, transform_indices = @transform_8, window_bounds = array<i64: 1, 256>}, {pipeline_mode = #tpu.pipeline_mode<synchronous>, transform_indices = @transform_9, window_bounds = array<i64: 8, 256>}, {pipeline_mode = #tpu.pipeline_mode<synchronous>, transform_indices = @transform_10, window_bounds = array<i64: 8, 1>}, {transform_indices = @transform_11, window_bounds = array<i64: 8, 256>}]} {
    %c0 = arith.constant 0 : index
    %c0_0 = arith.constant 0 : index
    %0 = vector.load %arg1[%c0, %c0_0] : memref<256x4xbf16, #tpu.memory_space<vmem>>, vector<256x4xbf16>
    %1 = arith.extf %0 : vector<256x4xbf16> to vector<256x4xf32>
    %c0_1 = arith.constant 0 : index
    %c0_2 = arith.constant 0 : index
    %2 = vector.load %arg2[%c0_1, %c0_2] : memref<4x256xf32, #tpu.memory_space<vmem>>, vector<4x256xf32>
    %3 = vector.extract_strided_slice %1 {offsets = [0, 0], sizes = [256, 1], strides = [1, 1]} : vector<256x4xf32> to vector<256x1xf32>
    %4 = vector.extract_strided_slice %2 {offsets = [0, 0], sizes = [1, 256], strides = [1, 1]} : vector<4x256xf32> to vector<1x256xf32>
    %5 = vector.broadcast %3 : vector<256x1xf32> to vector<256x256xf32>
    %6 = vector.broadcast %4 : vector<1x256xf32> to vector<256x256xf32>
    %7 = arith.mulf %5, %6 : vector<256x256xf32>
    %c0_3 = arith.constant 0 : index
    %c0_4 = arith.constant 0 : index
    %8 = vector.load %arg3[%c0_3, %c0_4] : memref<1x256xf32, #tpu.memory_space<vmem>>, vector<1x256xf32>
    %9 = vector.broadcast %8 : vector<1x256xf32> to vector<256x256xf32>
    %10 = arith.addf %7, %9 : vector<256x256xf32>
    %11 = vector.extract_strided_slice %1 {offsets = [0, 1], sizes = [256, 1], strides = [1, 1]} : vector<256x4xf32> to vector<256x1xf32>
    %12 = vector.extract_strided_slice %2 {offsets = [1, 0], sizes = [1, 256], strides = [1, 1]} : vector<4x256xf32> to vector<1x256xf32>
    %13 = vector.broadcast %11 : vector<256x1xf32> to vector<256x256xf32>
    %14 = vector.broadcast %12 : vector<1x256xf32> to vector<256x256xf32>
    %15 = arith.mulf %13, %14 : vector<256x256xf32>
    %16 = arith.addf %10, %15 : vector<256x256xf32>
    %17 = vector.extract_strided_slice %1 {offsets = [0, 2], sizes = [256, 1], strides = [1, 1]} : vector<256x4xf32> to vector<256x1xf32>
    %18 = vector.extract_strided_slice %2 {offsets = [2, 0], sizes = [1, 256], strides = [1, 1]} : vector<4x256xf32> to vector<1x256xf32>
    %19 = vector.broadcast %17 : vector<256x1xf32> to vector<256x256xf32>
    %20 = vector.broadcast %18 : vector<1x256xf32> to vector<256x256xf32>
    %21 = arith.mulf %19, %20 : vector<256x256xf32>
    %22 = arith.addf %16, %21 : vector<256x256xf32>
    %23 = vector.extract_strided_slice %1 {offsets = [0, 3], sizes = [256, 1], strides = [1, 1]} : vector<256x4xf32> to vector<256x1xf32>
    %24 = vector.extract_strided_slice %2 {offsets = [3, 0], sizes = [1, 256], strides = [1, 1]} : vector<4x256xf32> to vector<1x256xf32>
    %25 = vector.broadcast %23 : vector<256x1xf32> to vector<256x256xf32>
    %26 = vector.broadcast %24 : vector<1x256xf32> to vector<256x256xf32>
    %27 = arith.mulf %25, %26 : vector<256x256xf32>
    %28 = arith.addf %22, %27 : vector<256x256xf32>
    %29 = arith.truncf %28 : vector<256x256xf32> to vector<256x256xbf16>
    %c0_5 = arith.constant 0 : index
    %c0_6 = arith.constant 0 : index
    %30 = vector.load %arg4[%c0_5, %c0_6] : memref<256x256xbf16, #tpu.memory_space<vmem>>, vector<256x256xbf16>
    %cst = arith.constant dense<0.000000e+00> : vector<256x256xf32>
    %31 = tpu.matmul %29, %30, %cst {dimension_numbers = #tpu.dot_dimension_numbers<[1], [0], [0], [1], [0, 0, 1, 1], [], []>} : vector<256x256xbf16>, vector<256x256xbf16>, vector<256x256xf32> -> vector<256x256xf32>
    %c0_7 = arith.constant 0 : index
    %c0_8 = arith.constant 0 : index
    %32 = vector.load %arg5[%c0_7, %c0_8] : memref<1x256xf32, #tpu.memory_space<vmem>>, vector<1x256xf32>
    %33 = vector.broadcast %32 : vector<1x256xf32> to vector<256x256xf32>
    %34 = arith.addf %31, %33 : vector<256x256xf32>
    %35 = arith.truncf %34 : vector<256x256xf32> to vector<256x256xbf16>
    %c0_9 = arith.constant 0 : index
    %c0_10 = arith.constant 0 : index
    %36 = vector.load %arg6[%c0_9, %c0_10] : memref<256x256xbf16, #tpu.memory_space<vmem>>, vector<256x256xbf16>
    %cst_11 = arith.constant dense<0.000000e+00> : vector<256x256xf32>
    %37 = tpu.matmul %35, %36, %cst_11 {dimension_numbers = #tpu.dot_dimension_numbers<[1], [0], [0], [1], [0, 0, 1, 1], [], []>} : vector<256x256xbf16>, vector<256x256xbf16>, vector<256x256xf32> -> vector<256x256xf32>
    %c0_12 = arith.constant 0 : index
    %c0_13 = arith.constant 0 : index
    %38 = vector.load %arg7[%c0_12, %c0_13] : memref<1x256xf32, #tpu.memory_space<vmem>>, vector<1x256xf32>
    %39 = vector.broadcast %38 : vector<1x256xf32> to vector<256x256xf32>
    %40 = arith.addf %37, %39 : vector<256x256xf32>
    %41 = arith.truncf %40 : vector<256x256xf32> to vector<256x256xbf16>
    %c0_14 = arith.constant 0 : index
    %c0_15 = arith.constant 0 : index
    %42 = vector.load %arg8[%c0_14, %c0_15] : memref<256x256xbf16, #tpu.memory_space<vmem>>, vector<256x256xbf16>
    %cst_16 = arith.constant dense<0.000000e+00> : vector<256x256xf32>
    %43 = tpu.matmul %41, %42, %cst_16 {dimension_numbers = #tpu.dot_dimension_numbers<[1], [0], [0], [1], [0, 0, 1, 1], [], []>} : vector<256x256xbf16>, vector<256x256xbf16>, vector<256x256xf32> -> vector<256x256xf32>
    %c0_17 = arith.constant 0 : index
    %c0_18 = arith.constant 0 : index
    %44 = vector.load %arg9[%c0_17, %c0_18] : memref<1x256xf32, #tpu.memory_space<vmem>>, vector<1x256xf32>
    %45 = vector.broadcast %44 : vector<1x256xf32> to vector<256x256xf32>
    %46 = arith.addf %43, %45 : vector<256x256xf32>
    %c0_19 = arith.constant 0 : index
    %c0_20 = arith.constant 0 : index
    %47 = vector.load %arg10[%c0_19, %c0_20] : memref<8x256xbf16, #tpu.memory_space<vmem>>, vector<8x256xbf16>
    %48 = arith.truncf %46 : vector<256x256xf32> to vector<256x256xbf16>
    %cst_21 = arith.constant dense<0.000000e+00> : vector<8x256xf32>
    %49 = tpu.matmul %47, %48, %cst_21 {dimension_numbers = #tpu.dot_dimension_numbers<[1], [1], [0], [0], [0, 0, 1, 0], [], []>} : vector<8x256xbf16>, vector<256x256xbf16>, vector<8x256xf32> -> vector<8x256xf32>
    %c0_22 = arith.constant 0 : index
    %c0_23 = arith.constant 0 : index
    %50 = vector.load %arg11[%c0_22, %c0_23] : memref<8x1xf32, #tpu.memory_space<vmem>>, vector<8x1xf32>
    %51 = vector.broadcast %50 : vector<8x1xf32> to vector<8x256xf32>
    %52 = arith.addf %49, %51 : vector<8x256xf32>
    %c0_24 = arith.constant 0 : index
    %c0_25 = arith.constant 0 : index
    %53 = vector.load %arg12[%c0_24, %c0_25] : memref<8x256xf32, #tpu.memory_space<vmem>>, vector<8x256xf32>
    tpu.vector_store %arg12[%c0_24, %c0_25], %52 {strides = array<i32>} : memref<8x256xf32, #tpu.memory_space<vmem>>, vector<8x256xf32>,
    return
  }
  func.func @transform_0(%arg0: i32) -> (i32, i32) {
    %c0_i32 = arith.constant 0 : i32
    %c0_i32_0 = arith.constant 0 : i32
    return %arg0, %c0_i32 : i32, i32
  }
  func.func @transform_1(%arg0: i32) -> (i32, i32) {
    %c0_i32 = arith.constant 0 : i32
    %c0_i32_0 = arith.constant 0 : i32
    %c0_i32_1 = arith.constant 0 : i32
    return %c0_i32, %c0_i32_0 : i32, i32
  }
  func.func @transform_2(%arg0: i32) -> (i32, i32) {
    %c0_i32 = arith.constant 0 : i32
    %c0_i32_0 = arith.constant 0 : i32
    %c0_i32_1 = arith.constant 0 : i32
    return %c0_i32, %c0_i32_0 : i32, i32
  }
  func.func @transform_3(%arg0: i32) -> (i32, i32) {
    %c0_i32 = arith.constant 0 : i32
    %c0_i32_0 = arith.constant 0 : i32
    %c0_i32_1 = arith.constant 0 : i32
    return %c0_i32, %c0_i32_0 : i32, i32
  }
  func.func @transform_4(%arg0: i32) -> (i32, i32) {
    %c0_i32 = arith.constant 0 : i32
    %c0_i32_0 = arith.constant 0 : i32
    %c0_i32_1 = arith.constant 0 : i32
    return %c0_i32, %c0_i32_0 : i32, i32
  }
  func.func @transform_5(%arg0: i32) -> (i32, i32) {
    %c0_i32 = arith.constant 0 : i32
    %c0_i32_0 = arith.constant 0 : i32
    %c0_i32_1 = arith.constant 0 : i32
    return %c0_i32, %c0_i32_0 : i32, i32
  }
  func.func @transform_6(%arg0: i32) -> (i32, i32) {
    %c0_i32 = arith.constant 0 : i32
    %c0_i32_0 = arith.constant 0 : i32
    %c0_i32_1 = arith.constant 0 : i32
    return %c0_i32, %c0_i32_0 : i32, i32
  }
  func.func @transform_7(%arg0: i32) -> (i32, i32) {
    %c0_i32 = arith.constant 0 : i32
    %c0_i32_0 = arith.constant 0 : i32
    %c0_i32_1 = arith.constant 0 : i32
    return %c0_i32, %c0_i32_0 : i32, i32
  }
  func.func @transform_8(%arg0: i32) -> (i32, i32) {
    %c0_i32 = arith.constant 0 : i32
    %c0_i32_0 = arith.constant 0 : i32
    %c0_i32_1 = arith.constant 0 : i32
    return %c0_i32, %c0_i32_0 : i32, i32
  }
  func.func @transform_9(%arg0: i32) -> (i32, i32) {
    %c0_i32 = arith.constant 0 : i32
    %c0_i32_0 = arith.constant 0 : i32
    %c0_i32_1 = arith.constant 0 : i32
    return %c0_i32, %c0_i32_0 : i32, i32
  }
  func.func @transform_10(%arg0: i32) -> (i32, i32) {
    %c0_i32 = arith.constant 0 : i32
    %c0_i32_0 = arith.constant 0 : i32
    %c0_i32_1 = arith.constant 0 : i32
    return %c0_i32, %c0_i32_0 : i32, i32
  }
  func.func @transform_11(%arg0: i32) -> (i32, i32) {
    %c0_i32 = arith.constant 0 : i32
    %c0_i32_0 = arith.constant 0 : i32
    return %c0_i32, %arg0 : i32, i32
  }
}

</mosaic_0001>

<llo_original>
// kernel: lo_net_forward.1
$region0: #{lo_net_forward.1}
  #allocation0 [shape = 'u32[]', space=smem, size = 0x4, offset = 0x4, fixed_abs, tag = 'smem constant byte address 0x4 - core index']
  #allocation1 [shape = 'u32[144,128]{1,0:T(1,128)}', space=vmem, size = 0x12000, scoped, tag = 'internal scratch']
  %s0 = inlined_call_operand.vmem [shape: bf16[256,4], index: 0, kind: input, shape index: {}]
  %s1 = inlined_call_operand.vmem [shape: f32[4,256], index: 1, kind: input, shape index: {}]
  %s2 = inlined_call_operand.vmem [shape: f32[1,256], index: 2, kind: input, shape index: {}]
  %s3 = inlined_call_operand.hbm [shape: bf16[256,256], index: 3, kind: input, shape index: {}]
  %s4 = inlined_call_operand.vmem [shape: f32[1,256], index: 4, kind: input, shape index: {}]
  %s5 = inlined_call_operand.hbm [shape: bf16[256,256], index: 5, kind: input, shape index: {}]
  %s6 = inlined_call_operand.vmem [shape: f32[1,256], index: 6, kind: input, shape index: {}]
  %s7 = inlined_call_operand.hbm [shape: bf16[256,256], index: 7, kind: input, shape index: {}]
  %s8 = inlined_call_operand.vmem [shape: f32[1,256], index: 8, kind: input, shape index: {}]
  %s9 = inlined_call_operand.vmem [shape: bf16[8,256], index: 9, kind: input, shape index: {}]
  %s10 = inlined_call_operand.vmem [shape: f32[8,1], index: 10, kind: input, shape index: {}]
  %s11 = inlined_call_operand.vmem [shape: f32[8,256], index: 11, kind: output, shape index: {}]
  %s12 = sld [smem:[#allocation0]]
  $region66: #{lo_net_forward.1} parent=0
    _
  %s14 = ssub.s32 1, %s12
  %s15 = scalar_select 0, %s14, %s12
  $region1: #{lo_net_forward.1} parent=0
    #allocation2 [shape = 'u8[131072]{0}', space=vmem, size = 0x20000, scoped, tag = 'input window, operand 3, single buffered']
    #allocation3 [shape = 's32[1]{0}', space=sflag, size = 0x4, scoped, tag = 'scoped memory for lo_net_forward.1']
    #allocation4 [shape = 'u8[131072]{0}', space=vmem, size = 0x20000, scoped, tag = 'input window, operand 5, single buffered']
    #allocation5 [shape = 's32[1]{0}', space=sflag, size = 0x4, scoped, tag = 'scoped memory for lo_net_forward.1']
    #allocation6 [shape = 'u8[131072]{0}', space=vmem, size = 0x20000, scoped, tag = 'input window, operand 7, single buffered']
    %16 = vsyncpa [#allocation3], 0
    %17 = vsyncpa [#allocation5], 0
    // Predicated region
    $region2: #{lo_net_forward.1} parent=1 // pred_check
      _
    $region3: #{lo_net_forward.1} parent=1 // pred_check_branch
      %19 = sbr.rel (0) target = $region5
    $region4: #{lo_net_forward.1} parent=1 // pred_region
      _
    $region5: #{lo_net_forward.1} parent=1 // pred_fallthru
      _
    // Predicated region
    $region6: #{lo_net_forward.1} parent=1 // pred_check
      _
    $region7: #{lo_net_forward.1} parent=1 // pred_check_branch
      %21 = sbr.rel (0) target = $region9
    $region8: #{lo_net_forward.1} parent=1 // pred_region
      _
    $region9: #{lo_net_forward.1} parent=1 // pred_fallthru
      _
    // Predicated region
    $region10: #{lo_net_forward.1} parent=1 // pred_check
      _
    $region11: #{lo_net_forward.1} parent=1 // pred_check_branch
      %23 = sbr.rel (0) target = $region13
    $region12: #{lo_net_forward.1} parent=1 // pred_region
      _
    $region13: #{lo_net_forward.1} parent=1 // pred_fallthru
      _
    // Predicated region
    $region14: #{lo_net_forward.1} parent=1 // pred_check
      _
    $region15: #{lo_net_forward.1} parent=1 // pred_check_branch
      %25 = sbr.rel (0) target = $region17
    $region16: #{lo_net_forward.1} parent=1 // pred_region
      %s27 = ssub.s32 4096, 4096
      %28 = vsyncadd [#allocation3], %s27
      %s29 = sshll.u32 [#allocation2], 4
      %s30 = int_to_ptr.vmem [resolvable:$true] %s29
      %35 = dma.hbm_to_vmem [thread:$0]  %s3, 4096, %s30, [#allocation3], 128, 128, 8
    $region17: #{lo_net_forward.1} parent=1 // pred_fallthru
      _
    // Predicated region
    $region18: #{lo_net_forward.1} parent=1 // pred_check
      _
    $region19: #{lo_net_forward.1} parent=1 // pred_check_branch
      %37 = sbr.rel (0) target = $region21
    $region20: #{lo_net_forward.1} parent=1 // pred_region
      _
    $region21: #{lo_net_forward.1} parent=1 // pred_fallthru
      _
    // Predicated region
    $region22: #{lo_net_forward.1} parent=1 // pred_check
      _
    $region23: #{lo_net_forward.1} parent=1 // pred_check_branch
      %39 = sbr.rel (0) target = $region25
    $region24: #{lo_net_forward.1} parent=1 // pred_region
      %s41 = ssub.s32 4096, 4096
      %42 = vsyncadd [#allocation5], %s41
      %s43 = sshll.u32 [#allocation4], 4
      %s44 = int_to_ptr.vmem [resolvable:$true] %s43
      %49 = dma.hbm_to_vmem [thread:$0]  %s5, 4096, %s44, [#allocation5], 128, 128, 8
    $region25: #{lo_net_forward.1} parent=1 // pred_fallthru
      _
    // Predicated region
    $region26: #{lo_net_forward.1} parent=1 // pred_check
      _
    $region27: #{lo_net_forward.1} parent=1 // pred_check_branch
      %51 = sbr.rel (0) target = $region29
    $region28: #{lo_net_forward.1} parent=1 // pred_region
      _
    $region29: #{lo_net_forward.1} parent=1 // pred_fallthru
      _
    // Predicated region
    $region30: #{lo_net_forward.1} parent=1 // pred_check
      _
    $region31: #{lo_net_forward.1} parent=1 // pred_check_branch
      %53 = sbr.rel (0) target = $region33
    $region32: #{lo_net_forward.1} parent=1 // pred_region
      %s55 = ssub.s32 4096, 4096
      %56 = vsyncadd [#allocation5], %s55
      %s57 = sshll.u32 [#allocation6], 4
      %s58 = int_to_ptr.vmem [resolvable:$true] %s57
      %63 = dma.hbm_to_vmem [thread:$0]  %s7, 4096, %s58, [#allocation5], 128, 128, 8
    $region33: #{lo_net_forward.1} parent=1 // pred_fallthru
      _
    // Predicated region
    $region34: #{lo_net_forward.1} parent=1 // pred_check
      _
    $region35: #{lo_net_forward.1} parent=1 // pred_check_branch
      %65 = sbr.rel (0) target = $region37
    $region36: #{lo_net_forward.1} parent=1 // pred_region
      _
    $region37: #{lo_net_forward.1} parent=1 // pred_fallthru
      _
    // Predicated region
    $region38: #{lo_net_forward.1} parent=1 // pred_check
      _
    $region39: #{lo_net_forward.1} parent=1 // pred_check_branch
      %67 = sbr.rel (0) target = $region41
    $region40: #{lo_net_forward.1} parent=1 // pred_region
      _
    $region41: #{lo_net_forward.1} parent=1 // pred_fallthru
      _
    // Predicated region
    $region42: #{lo_net_forward.1} parent=1 // pred_check
      _
    $region43: #{lo_net_forward.1} parent=1 // pred_check_branch
      %69 = sbr.rel (0) target = $region45
    $region44: #{lo_net_forward.1} parent=1 // pred_region
      _
    $region45: #{lo_net_forward.1} parent=1 // pred_fallthru
      _
    // Predicated region
    $region46: #{lo_net_forward.1} parent=1 // pred_check
      _
    $region47: #{lo_net_forward.1} parent=1 // pred_check_branch
      %71 = sbr.rel (0) target = $region49
    $region48: #{lo_net_forward.1} parent=1 // pred_region
      %72 = dma.done [#allocation3], 4096
    $region49: #{lo_net_forward.1} parent=1 // pred_fallthru
      _
    // Predicated region
    $region50: #{lo_net_forward.1} parent=1 // pred_check
      _
    $region51: #{lo_net_forward.1} parent=1 // pred_check_branch
      %74 = sbr.rel (0) target = $region53
    $region52: #{lo_net_forward.1} parent=1 // pred_region
      %75 = dma.done [#allocation5], 4096
    $region53: #{lo_net_forward.1} parent=1 // pred_fallthru
      _
    // Predicated region
    $region54: #{lo_net_forward.1} parent=1 // pred_check
      _
    $region55: #{lo_net_forward.1} parent=1 // pred_check_branch
      %77 = sbr.rel (0) target = $region57
    $region56: #{lo_net_forward.1} parent=1 // pred_region
      %78 = dma.done [#allocation5], 4096
    $region57: #{lo_net_forward.1} parent=1 // pred_fallthru
      _
    %v79 = vld [vmem:[%s0] sm:$0xf]
    %v80 = vld [vmem:[%s0 + $0x4] sm:$0xf]
    %v81 = vld [vmem:[%s0 + $0x8] sm:$0xf]
    %v82 = vld [vmem:[%s0 + $0xc] sm:$0xf]
    %v83 = vld [vmem:[%s0 + $0x10] sm:$0xf]
    %v84 = vld [vmem:[%s0 + $0x14] sm:$0xf]
    %v85 = vld [vmem:[%s0 + $0x18] sm:$0xf]
    %v86 = vld [vmem:[%s0 + $0x1c] sm:$0xf]
    %v87 = vld [vmem:[%s0 + $0x20] sm:$0xf]
    %v88 = vld [vmem:[%s0 + $0x24] sm:$0xf]
    %v89 = vld [vmem:[%s0 + $0x28] sm:$0xf]
    %v90 = vld [vmem:[%s0 + $0x2c] sm:$0xf]
    %v91 = vld [vmem:[%s0 + $0x30] sm:$0xf]
    %v92 = vld [vmem:[%s0 + $0x34] sm:$0xf]
    %v93 = vld [vmem:[%s0 + $0x38] sm:$0xf]
    %v94 = vld [vmem:[%s0 + $0x3c] sm:$0xf]
    %v95 = vld [vmem:[%s0 + $0x40] sm:$0xf]
    %v96 = vld [vmem:[%s0 + $0x44] sm:$0xf]
    %v97 = vld [vmem:[%s0 + $0x48] sm:$0xf]
    %v98 = vld [vmem:[%s0 + $0x4c] sm:$0xf]
    %v99 = vld [vmem:[%s0 + $0x50] sm:$0xf]
    %v100 = vld [vmem:[%s0 + $0x54] sm:$0xf]
    %v101 = vld [vmem:[%s0 + $0x58] sm:$0xf]
    %v102 = vld [vmem:[%s0 + $0x5c] sm:$0xf]
    %v103 = vld [vmem:[%s0 + $0x60] sm:$0xf]
    %v104 = vld [vmem:[%s0 + $0x64] sm:$0xf]
    %v105 = vld [vmem:[%s0 + $0x68] sm:$0xf]
    %v106 = vld [vmem:[%s0 + $0x6c] sm:$0xf]
    %v107 = vld [vmem:[%s0 + $0x70] sm:$0xf]
    %v108 = vld [vmem:[%s0 + $0x74] sm:$0xf]
    %v109 = vld [vmem:[%s0 + $0x78] sm:$0xf]
    %v110 = vld [vmem:[%s0 + $0x7c] sm:$0xf]
    %v111 = vunpack.c.l.bf16 %v79
    %v112 = vunpack.c.l.bf16 %v80
    %v113 = vunpack.c.l.bf16 %v81
    %v114 = vunpack.c.l.bf16 %v82
    %v115 = vunpack.c.l.bf16 %v83
    %v116 = vunpack.c.l.bf16 %v84
    %v117 = vunpack.c.l.bf16 %v85
    %v118 = vunpack.c.l.bf16 %v86
    %v119 = vunpack.c.l.bf16 %v87
    %v120 = vunpack.c.l.bf16 %v88
    %v121 = vunpack.c.l.bf16 %v89
    %v122 = vunpack.c.l.bf16 %v90
    %v123 = vunpack.c.l.bf16 %v91
    %v124 = vunpack.c.l.bf16 %v92
    %v125 = vunpack.c.l.bf16 %v93
    %v126 = vunpack.c.l.bf16 %v94
    %v127 = vunpack.c.l.bf16 %v95
    %v128 = vunpack.c.l.bf16 %v96
    %v129 = vunpack.c.l.bf16 %v97
    %v130 = vunpack.c.l.bf16 %v98
    %v131 = vunpack.c.l.bf16 %v99
    %v132 = vunpack.c.l.bf16 %v100
    %v133 = vunpack.c.l.bf16 %v101
    %v134 = vunpack.c.l.bf16 %v102
    %v135 = vunpack.c.l.bf16 %v103
    %v136 = vunpack.c.l.bf16 %v104
    %v137 = vunpack.c.l.bf16 %v105
    %v138 = vunpack.c.l.bf16 %v106
    %v139 = vunpack.c.l.bf16 %v107
    %v140 = vunpack.c.l.bf16 %v108
    %v141 = vunpack.c.l.bf16 %v109
    %v142 = vunpack.c.l.bf16 %v110
    %v143 = vld [vmem:[%s1] sm:$0xff]
    %145 = vset.pattern.permute.xlu0 0
    %146 = vperm.xlu0 %145, %v111
    %v147 = vpop.permute.xlu0 %146
    %150 = vset.pattern.permute.xlu0 0
    %151 = vperm.xlu0 %150, %v112
    %v152 = vpop.permute.xlu0 %151
    %155 = vset.pattern.permute.xlu0 0
    %156 = vperm.xlu0 %155, %v113
    %v157 = vpop.permute.xlu0 %156
    %160 = vset.pattern.permute.xlu0 0
    %161 = vperm.xlu0 %160, %v114
    %v162 = vpop.permute.xlu0 %161
    %165 = vset.pattern.permute.xlu0 0
    %166 = vperm.xlu0 %165, %v115
    %v167 = vpop.permute.xlu0 %166
    %170 = vset.pattern.permute.xlu0 0
    %171 = vperm.xlu0 %170, %v116
    %v172 = vpop.permute.xlu0 %171
    %175 = vset.pattern.permute.xlu0 0
    %176 = vperm.xlu0 %175, %v117
    %v177 = vpop.permute.xlu0 %176
    %180 = vset.pattern.permute.xlu0 0
    %181 = vperm.xlu0 %180, %v118
    %v182 = vpop.permute.xlu0 %181
    %185 = vset.pattern.permute.xlu0 0
    %186 = vperm.xlu0 %185, %v119
    %v187 = vpop.permute.xlu0 %186
    %190 = vset.pattern.permute.xlu0 0
    %191 = vperm.xlu0 %190, %v120
    %v192 = vpop.permute.xlu0 %191
    %195 = vset.pattern.permute.xlu0 0
    %196 = vperm.xlu0 %195, %v121
    %v197 = vpop.permute.xlu0 %196
    %200 = vset.pattern.permute.xlu0 0
    %201 = vperm.xlu0 %200, %v122
    %v202 = vpop.permute.xlu0 %201
    %205 = vset.pattern.permute.xlu0 0
    %206 = vperm.xlu0 %205, %v123
    %v207 = vpop.permute.xlu0 %206
    %210 = vset.pattern.permute.xlu0 0
    %211 = vperm.xlu0 %210, %v124
    %v212 = vpop.permute.xlu0 %211
    %215 = vset.pattern.permute.xlu0 0
    %216 = vperm.xlu0 %215, %v125
    %v217 = vpop.permute.xlu0 %216
    %220 = vset.pattern.permute.xlu0 0
    %221 = vperm.xlu0 %220, %v126
    %v222 = vpop.permute.xlu0 %221
    %225 = vset.pattern.permute.xlu0 0
    %226 = vperm.xlu0 %225, %v127
    %v227 = vpop.permute.xlu0 %226
    %230 = vset.pattern.permute.xlu0 0
    %231 = vperm.xlu0 %230, %v128
    %v232 = vpop.permute.xlu0 %231
    %235 = vset.pattern.permute.xlu0 0
    %236 = vperm.xlu0 %235, %v129
    %v237 = vpop.permute.xlu0 %236
    %240 = vset.pattern.permute.xlu0 0
    %241 = vperm.xlu0 %240, %v130
    %v242 = vpop.permute.xlu0 %241
    %245 = vset.pattern.permute.xlu0 0
    %246 = vperm.xlu0 %245, %v131
    %v247 = vpop.permute.xlu0 %246
    %250 = vset.pattern.permute.xlu0 0
    %251 = vperm.xlu0 %250, %v132
    %v252 = vpop.permute.xlu0 %251
    %255 = vset.pattern.permute.xlu0 0
    %256 = vperm.xlu0 %255, %v133
    %v257 = vpop.permute.xlu0 %256
    %260 = vset.pattern.permute.xlu0 0
    %261 = vperm.xlu0 %260, %v134
    %v262 = vpop.permute.xlu0 %261
    %265 = vset.pattern.permute.xlu0 0
    %266 = vperm.xlu0 %265, %v135
    %v267 = vpop.permute.xlu0 %266
    %270 = vset.pattern.permute.xlu0 0
    %271 = vperm.xlu0 %270, %v136
    %v272 = vpop.permute.xlu0 %271
    %275 = vset.pattern.permute.xlu0 0
    %276 = vperm.xlu0 %275, %v137
    %v277 = vpop.permute.xlu0 %276
    %280 = vset.pattern.permute.xlu0 0
    %281 = vperm.xlu0 %280, %v138
    %v282 = vpop.permute.xlu0 %281
    %285 = vset.pattern.permute.xlu0 0
    %286 = vperm.xlu0 %285, %v139
    %v287 = vpop.permute.xlu0 %286
    %290 = vset.pattern.permute.xlu0 0
    %291 = vperm.xlu0 %290, %v140
    %v292 = vpop.permute.xlu0 %291
    %295 = vset.pattern.permute.xlu0 0
    %296 = vperm.xlu0 %295, %v141
    %v297 = vpop.permute.xlu0 %296
    %300 = vset.pattern.permute.xlu0 0
    %301 = vperm.xlu0 %300, %v142
    %v302 = vpop.permute.xlu0 %301
    %v305 = vlaneseq
    %v306 = vshrl.u32 %v305, 7
    %v307 = vsub.s32 0, %v306
    %v308 = vrot.slane %v143, %v307
    %v309 = vlaneseq
    %v310 = vshrl.u32 %v309, 7
    %v311 = vsub.s32 4, %v310
    %v312 = vrot.slane %v143, %v311
    %v315 = vlaneseq
    %v316 = vshrl.u32 %v315, 7
    %v317 = vsub.s32 0, %v316
    %v318 = vrot.slane %v308, %v317
    %v319 = vlaneseq
    %v320 = vshrl.u32 %v319, 7
    %v321 = vsub.s32 0, %v320
    %v322 = vrot.slane %v312, %v321
    %v323 = vmul.f32 %v147, %v318
    %v324 = vmul.f32 %v147, %v322
    %v325 = vmul.f32 %v152, %v318
    %v326 = vmul.f32 %v152, %v322
    %v327 = vmul.f32 %v157, %v318
    %v328 = vmul.f32 %v157, %v322
    %v329 = vmul.f32 %v162, %v318
    %v330 = vmul.f32 %v162, %v322
    %v331 = vmul.f32 %v167, %v318
    %v332 = vmul.f32 %v167, %v322
    %v333 = vmul.f32 %v172, %v318
    %v334 = vmul.f32 %v172, %v322
    %v335 = vmul.f32 %v177, %v318
    %v336 = vmul.f32 %v177, %v322
    %v337 = vmul.f32 %v182, %v318
    %v338 = vmul.f32 %v182, %v322
    %v339 = vmul.f32 %v187, %v318
    %v340 = vmul.f32 %v187, %v322
    %v341 = vmul.f32 %v192, %v318
    %v342 = vmul.f32 %v192, %v322
    %v343 = vmul.f32 %v197, %v318
    %v344 = vmul.f32 %v197, %v322
    %v345 = vmul.f32 %v202, %v318
    %v346 = vmul.f32 %v202, %v322
    %v347 = vmul.f32 %v207, %v318
    %v348 = vmul.f32 %v207, %v322
    %v349 = vmul.f32 %v212, %v318
    %v350 = vmul.f32 %v212, %v322
    %v351 = vmul.f32 %v217, %v318
    %v352 = vmul.f32 %v217, %v322
    %v353 = vmul.f32 %v222, %v318
    %v354 = vmul.f32 %v222, %v322
    %v355 = vmul.f32 %v227, %v318
    %v356 = vmul.f32 %v227, %v322
    %v357 = vmul.f32 %v232, %v318
    %v358 = vmul.f32 %v232, %v322
    %v359 = vmul.f32 %v237, %v318
    %v360 = vmul.f32 %v237, %v322
    %v361 = vmul.f32 %v242, %v318
    %v362 = vmul.f32 %v242, %v322
    %v363 = vmul.f32 %v247, %v318
    %v364 = vmul.f32 %v247, %v322
    %v365 = vmul.f32 %v252, %v318
    %v366 = vmul.f32 %v252, %v322
    %v367 = vmul.f32 %v257, %v318
    %v368 = vmul.f32 %v257, %v322
    %v369 = vmul.f32 %v262, %v318
    %v370 = vmul.f32 %v262, %v322
    %v371 = vmul.f32 %v267, %v318
    %v372 = vmul.f32 %v267, %v322
    %v373 = vmul.f32 %v272, %v318
    %v374 = vmul.f32 %v272, %v322
    %v375 = vmul.f32 %v277, %v318
    %v376 = vmul.f32 %v277, %v322
    %v377 = vmul.f32 %v282, %v318
    %v378 = vmul.f32 %v282, %v322
    %v379 = vmul.f32 %v287, %v318
    %v380 = vmul.f32 %v287, %v322
    %v381 = vmul.f32 %v292, %v318
    %v382 = vmul.f32 %v292, %v322
    %v383 = vmul.f32 %v297, %v318
    %v384 = vmul.f32 %v297, %v322
    %v385 = vmul.f32 %v302, %v318
    %v386 = vmul.f32 %v302, %v322
    %v387 = vld [vmem:[%s2] sm:$0x3]
    %v389 = vlaneseq
    %v390 = vshrl.u32 %v389, 7
    %v391 = vsub.s32 0, %v390
    %v392 = vrot.slane %v387, %v391
    %v393 = vlaneseq
    %v394 = vshrl.u32 %v393, 7
    %v395 = vsub.s32 1, %v394
    %v396 = vrot.slane %v387, %v395
    %v399 = vadd.f32 %v323, %v392
    %v400 = vadd.f32 %v324, %v396
    %v401 = vadd.f32 %v325, %v392
    %v402 = vadd.f32 %v326, %v396
    %v403 = vadd.f32 %v327, %v392
    %v404 = vadd.f32 %v328, %v396
    %v405 = vadd.f32 %v329, %v392
    %v406 = vadd.f32 %v330, %v396
    %v407 = vadd.f32 %v331, %v392
    %v408 = vadd.f32 %v332, %v396
    %v409 = vadd.f32 %v333, %v392
    %v410 = vadd.f32 %v334, %v396
    %v411 = vadd.f32 %v335, %v392
    %v412 = vadd.f32 %v336, %v396
    %v413 = vadd.f32 %v337, %v392
    %v414 = vadd.f32 %v338, %v396
    %v415 = vadd.f32 %v339, %v392
    %v416 = vadd.f32 %v340, %v396
    %v417 = vadd.f32 %v341, %v392
    %v418 = vadd.f32 %v342, %v396
    %v419 = vadd.f32 %v343, %v392
    %v420 = vadd.f32 %v344, %v396
    %v421 = vadd.f32 %v345, %v392
    %v422 = vadd.f32 %v346, %v396
    %v423 = vadd.f32 %v347, %v392
    %v424 = vadd.f32 %v348, %v396
    %v425 = vadd.f32 %v349, %v392
    %v426 = vadd.f32 %v350, %v396
    %v427 = vadd.f32 %v351, %v392
    %v428 = vadd.f32 %v352, %v396
    %v429 = vadd.f32 %v353, %v392
    %v430 = vadd.f32 %v354, %v396
    %v431 = vadd.f32 %v355, %v392
    %v432 = vadd.f32 %v356, %v396
    %v433 = vadd.f32 %v357, %v392
    %v434 = vadd.f32 %v358, %v396
    %v435 = vadd.f32 %v359, %v392
    %v436 = vadd.f32 %v360, %v396
    %v437 = vadd.f32 %v361, %v392
    %v438 = vadd.f32 %v362, %v396
    %v439 = vadd.f32 %v363, %v392
    %v440 = vadd.f32 %v364, %v396
    %v441 = vadd.f32 %v365, %v392
    %v442 = vadd.f32 %v366, %v396
    %v443 = vadd.f32 %v367, %v392
    %v444 = vadd.f32 %v368, %v396
    %v445 = vadd.f32 %v369, %v392
    %v446 = vadd.f32 %v370, %v396
    %v447 = vadd.f32 %v371, %v392
    %v448 = vadd.f32 %v372, %v396
    %v449 = vadd.f32 %v373, %v392
    %v450 = vadd.f32 %v374, %v396
    %v451 = vadd.f32 %v375, %v392
    %v452 = vadd.f32 %v376, %v396
    %v453 = vadd.f32 %v377, %v392
    %v454 = vadd.f32 %v378, %v396
    %v455 = vadd.f32 %v379, %v392
    %v456 = vadd.f32 %v380, %v396
    %v457 = vadd.f32 %v381, %v392
    %v458 = vadd.f32 %v382, %v396
    %v459 = vadd.f32 %v383, %v392
    %v460 = vadd.f32 %v384, %v396
    %v461 = vadd.f32 %v385, %v392
    %v462 = vadd.f32 %v386, %v396
    %463 = vset.pattern.permute.xlu0 1
    %464 = vperm.xlu0 %463, %v111
    %v465 = vpop.permute.xlu0 %464
    %467 = vset.pattern.permute.xlu0 1
    %468 = vperm.xlu0 %467, %v112
    %v469 = vpop.permute.xlu0 %468
    %471 = vset.pattern.permute.xlu0 1
    %472 = vperm.xlu0 %471, %v113
    %v473 = vpop.permute.xlu0 %472
    %475 = vset.pattern.permute.xlu0 1
    %476 = vperm.xlu0 %475, %v114
    %v477 = vpop.permute.xlu0 %476
    %479 = vset.pattern.permute.xlu0 1
    %480 = vperm.xlu0 %479, %v115
    %v481 = vpop.permute.xlu0 %480
    %483 = vset.pattern.permute.xlu0 1
    %484 = vperm.xlu0 %483, %v116
    %v485 = vpop.permute.xlu0 %484
    %487 = vset.pattern.permute.xlu0 1
    %488 = vperm.xlu0 %487, %v117
    %v489 = vpop.permute.xlu0 %488
    %491 = vset.pattern.permute.xlu0 1
    %492 = vperm.xlu0 %491, %v118
    %v493 = vpop.permute.xlu0 %492
    %495 = vset.pattern.permute.xlu0 1
    %496 = vperm.xlu0 %495, %v119
    %v497 = vpop.permute.xlu0 %496
    %499 = vset.pattern.permute.xlu0 1
    %500 = vperm.xlu0 %499, %v120
    %v501 = vpop.permute.xlu0 %500
    %503 = vset.pattern.permute.xlu0 1
    %504 = vperm.xlu0 %503, %v121
    %v505 = vpop.permute.xlu0 %504
    %507 = vset.pattern.permute.xlu0 1
    %508 = vperm.xlu0 %507, %v122
    %v509 = vpop.permute.xlu0 %508
    %511 = vset.pattern.permute.xlu0 1
    %512 = vperm.xlu0 %511, %v123
    %v513 = vpop.permute.xlu0 %512
    %515 = vset.pattern.permute.xlu0 1
    %516 = vperm.xlu0 %515, %v124
    %v517 = vpop.permute.xlu0 %516
    %519 = vset.pattern.permute.xlu0 1
    %520 = vperm.xlu0 %519, %v125
    %v521 = vpop.permute.xlu0 %520
    %523 = vset.pattern.permute.xlu0 1
    %524 = vperm.xlu0 %523, %v126
    %v525 = vpop.permute.xlu0 %524
    %527 = vset.pattern.permute.xlu0 1
    %528 = vperm.xlu0 %527, %v127
    %v529 = vpop.permute.xlu0 %528
    %531 = vset.pattern.permute.xlu0 1
    %532 = vperm.xlu0 %531, %v128
    %v533 = vpop.permute.xlu0 %532
    %535 = vset.pattern.permute.xlu0 1
    %536 = vperm.xlu0 %535, %v129
    %v537 = vpop.permute.xlu0 %536
    %539 = vset.pattern.permute.xlu0 1
    %540 = vperm.xlu0 %539, %v130
    %v541 = vpop.permute.xlu0 %540
    %543 = vset.pattern.permute.xlu0 1
    %544 = vperm.xlu0 %543, %v131
    %v545 = vpop.permute.xlu0 %544
    %547 = vset.pattern.permute.xlu0 1
    %548 = vperm.xlu0 %547, %v132
    %v549 = vpop.permute.xlu0 %548
    %551 = vset.pattern.permute.xlu0 1
    %552 = vperm.xlu0 %551, %v133
    %v553 = vpop.permute.xlu0 %552
    %555 = vset.pattern.permute.xlu0 1
    %556 = vperm.xlu0 %555, %v134
    %v557 = vpop.permute.xlu0 %556
    %559 = vset.pattern.permute.xlu0 1
    %560 = vperm.xlu0 %559, %v135
    %v561 = vpop.permute.xlu0 %560
    %563 = vset.pattern.permute.xlu0 1
    %564 = vperm.xlu0 %563, %v136
    %v565 = vpop.permute.xlu0 %564
    %567 = vset.pattern.permute.xlu0 1
    %568 = vperm.xlu0 %567, %v137
    %v569 = vpop.permute.xlu0 %568
    %571 = vset.pattern.permute.xlu0 1
    %572 = vperm.xlu0 %571, %v138
    %v573 = vpop.permute.xlu0 %572
    %575 = vset.pattern.permute.xlu0 1
    %576 = vperm.xlu0 %575, %v139
    %v577 = vpop.permute.xlu0 %576
    %579 = vset.pattern.permute.xlu0 1
    %580 = vperm.xlu0 %579, %v140
    %v581 = vpop.permute.xlu0 %580
    %583 = vset.pattern.permute.xlu0 1
    %584 = vperm.xlu0 %583, %v141
    %v585 = vpop.permute.xlu0 %584
    %587 = vset.pattern.permute.xlu0 1
    %588 = vperm.xlu0 %587, %v142
    %v589 = vpop.permute.xlu0 %588
    %v591 = vlaneseq
    %v592 = vshrl.u32 %v591, 7
    %v593 = vsub.s32 1, %v592
    %v594 = vrot.slane %v143, %v593
    %v595 = vlaneseq
    %v596 = vshrl.u32 %v595, 7
    %v597 = vsub.s32 5, %v596
    %v598 = vrot.slane %v143, %v597
    %v601 = vlaneseq
    %v602 = vshrl.u32 %v601, 7
    %v603 = vsub.s32 1, %v602
    %v604 = vrot.slane %v594, %v603
    %v605 = vlaneseq
    %v606 = vshrl.u32 %v605, 7
    %v607 = vsub.s32 1, %v606
    %v608 = vrot.slane %v598, %v607
    %v609 = vmul.f32 %v465, %v604
    %v610 = vmul.f32 %v465, %v608
    %v611 = vmul.f32 %v469, %v604
    %v612 = vmul.f32 %v469, %v608
    %v613 = vmul.f32 %v473, %v604
    %v614 = vmul.f32 %v473, %v608
    %v615 = vmul.f32 %v477, %v604
    %v616 = vmul.f32 %v477, %v608
    %v617 = vmul.f32 %v481, %v604
    %v618 = vmul.f32 %v481, %v608
    %v619 = vmul.f32 %v485, %v604
    %v620 = vmul.f32 %v485, %v608
    %v621 = vmul.f32 %v489, %v604
    %v622 = vmul.f32 %v489, %v608
    %v623 = vmul.f32 %v493, %v604
    %v624 = vmul.f32 %v493, %v608
    %v625 = vmul.f32 %v497, %v604
    %v626 = vmul.f32 %v497, %v608
    %v627 = vmul.f32 %v501, %v604
    %v628 = vmul.f32 %v501, %v608
    %v629 = vmul.f32 %v505, %v604
    %v630 = vmul.f32 %v505, %v608
    %v631 = vmul.f32 %v509, %v604
    %v632 = vmul.f32 %v509, %v608
    %v633 = vmul.f32 %v513, %v604
    %v634 = vmul.f32 %v513, %v608
    %v635 = vmul.f32 %v517, %v604
    %v636 = vmul.f32 %v517, %v608
    %v637 = vmul.f32 %v521, %v604
    %v638 = vmul.f32 %v521, %v608
    %v639 = vmul.f32 %v525, %v604
    %v640 = vmul.f32 %v525, %v608
    %v641 = vmul.f32 %v529, %v604
    %v642 = vmul.f32 %v529, %v608
    %v643 = vmul.f32 %v533, %v604
    %v644 = vmul.f32 %v533, %v608
    %v645 = vmul.f32 %v537, %v604
    %v646 = vmul.f32 %v537, %v608
    %v647 = vmul.f32 %v541, %v604
    %v648 = vmul.f32 %v541, %v608
    %v649 = vmul.f32 %v545, %v604
    %v650 = vmul.f32 %v545, %v608
    %v651 = vmul.f32 %v549, %v604
    %v652 = vmul.f32 %v549, %v608
    %v653 = vmul.f32 %v553, %v604
    %v654 = vmul.f32 %v553, %v608
    %v655 = vmul.f32 %v557, %v604
    %v656 = vmul.f32 %v557, %v608
    %v657 = vmul.f32 %v561, %v604
    %v658 = vmul.f32 %v561, %v608
    %v659 = vmul.f32 %v565, %v604
    %v660 = vmul.f32 %v565, %v608
    %v661 = vmul.f32 %v569, %v604
    %v662 = vmul.f32 %v569, %v608
    %v663 = vmul.f32 %v573, %v604
    %v664 = vmul.f32 %v573, %v608
    %v665 = vmul.f32 %v577, %v604
    %v666 = vmul.f32 %v577, %v608
    %v667 = vmul.f32 %v581, %v604
    %v668 = vmul.f32 %v581, %v608
    %v669 = vmul.f32 %v585, %v604
    %v670 = vmul.f32 %v585, %v608
    %v671 = vmul.f32 %v589, %v604
    %v672 = vmul.f32 %v589, %v608
    %v673 = vadd.f32 %v399, %v609
    %v674 = vadd.f32 %v400, %v610
    %v675 = vadd.f32 %v401, %v611
    %v676 = vadd.f32 %v402, %v612
    %v677 = vadd.f32 %v403, %v613
    %v678 = vadd.f32 %v404, %v614
    %v679 = vadd.f32 %v405, %v615
    %v680 = vadd.f32 %v406, %v616
    %v681 = vadd.f32 %v407, %v617
    %v682 = vadd.f32 %v408, %v618
    %v683 = vadd.f32 %v409, %v619
    %v684 = vadd.f32 %v410, %v620
    %v685 = vadd.f32 %v411, %v621
    %v686 = vadd.f32 %v412, %v622
    %v687 = vadd.f32 %v413, %v623
    %v688 = vadd.f32 %v414, %v624
    %v689 = vadd.f32 %v415, %v625
    %v690 = vadd.f32 %v416, %v626
    %v691 = vadd.f32 %v417, %v627
    %v692 = vadd.f32 %v418, %v628
    %v693 = vadd.f32 %v419, %v629
    %v694 = vadd.f32 %v420, %v630
    %v695 = vadd.f32 %v421, %v631
    %v696 = vadd.f32 %v422, %v632
    %v697 = vadd.f32 %v423, %v633
    %v698 = vadd.f32 %v424, %v634
    %v699 = vadd.f32 %v425, %v635
    %v700 = vadd.f32 %v426, %v636
    %v701 = vadd.f32 %v427, %v637
    %v702 = vadd.f32 %v428, %v638
    %v703 = vadd.f32 %v429, %v639
    %v704 = vadd.f32 %v430, %v640
    %v705 = vadd.f32 %v431, %v641
    %v706 = vadd.f32 %v432, %v642
    %v707 = vadd.f32 %v433, %v643
    %v708 = vadd.f32 %v434, %v644
    %v709 = vadd.f32 %v435, %v645
    %v710 = vadd.f32 %v436, %v646
    %v711 = vadd.f32 %v437, %v647
    %v712 = vadd.f32 %v438, %v648
    %v713 = vadd.f32 %v439, %v649
    %v714 = vadd.f32 %v440, %v650
    %v715 = vadd.f32 %v441, %v651
    %v716 = vadd.f32 %v442, %v652
    %v717 = vadd.f32 %v443, %v653
    %v718 = vadd.f32 %v444, %v654
    %v719 = vadd.f32 %v445, %v655
    %v720 = vadd.f32 %v446, %v656
    %v721 = vadd.f32 %v447, %v657
    %v722 = vadd.f32 %v448, %v658
    %v723 = vadd.f32 %v449, %v659
    %v724 = vadd.f32 %v450, %v660
    %v725 = vadd.f32 %v451, %v661
    %v726 = vadd.f32 %v452, %v662
    %v727 = vadd.f32 %v453, %v663
    %v728 = vadd.f32 %v454, %v664
    %v729 = vadd.f32 %v455, %v665
    %v730 = vadd.f32 %v456, %v666
    %v731 = vadd.f32 %v457, %v667
    %v732 = vadd.f32 %v458, %v668
    %v733 = vadd.f32 %v459, %v669
    %v734 = vadd.f32 %v460, %v670
    %v735 = vadd.f32 %v461, %v671
    %v736 = vadd.f32 %v462, %v672
    %737 = vset.pattern.permute.xlu0 2
    %738 = vperm.xlu0 %737, %v111
    %v739 = vpop.permute.xlu0 %738
    %741 = vset.pattern.permute.xlu0 2
    %742 = vperm.xlu0 %741, %v112
    %v743 = vpop.permute.xlu0 %742
    %745 = vset.pattern.permute.xlu0 2
    %746 = vperm.xlu0 %745, %v113
    %v747 = vpop.permute.xlu0 %746
    %749 = vset.pattern.permute.xlu0 2
    %750 = vperm.xlu0 %749, %v114
    %v751 = vpop.permute.xlu0 %750
    %753 = vset.pattern.permute.xlu0 2
    %754 = vperm.xlu0 %753, %v115
    %v755 = vpop.permute.xlu0 %754
    %757 = vset.pattern.permute.xlu0 2
    %758 = vperm.xlu0 %757, %v116
    %v759 = vpop.permute.xlu0 %758
    %761 = vset.pattern.permute.xlu0 2
    %762 = vperm.xlu0 %761, %v117
    %v763 = vpop.permute.xlu0 %762
    %765 = vset.pattern.permute.xlu0 2
    %766 = vperm.xlu0 %765, %v118
    %v767 = vpop.permute.xlu0 %766
    %769 = vset.pattern.permute.xlu0 2
    %770 = vperm.xlu0 %769, %v119
    %v771 = vpop.permute.xlu0 %770
    %773 = vset.pattern.permute.xlu0 2
    %774 = vperm.xlu0 %773, %v120
    %v775 = vpop.permute.xlu0 %774
    %777 = vset.pattern.permute.xlu0 2
    %778 = vperm.xlu0 %777, %v121
    %v779 = vpop.permute.xlu0 %778
    %781 = vset.pattern.permute.xlu0 2
    %782 = vperm.xlu0 %781, %v122
    %v783 = vpop.permute.xlu0 %782
    %785 = vset.pattern.permute.xlu0 2
    %786 = vperm.xlu0 %785, %v123
    %v787 = vpop.permute.xlu0 %786
    %789 = vset.pattern.permute.xlu0 2
    %790 = vperm.xlu0 %789, %v124
    %v791 = vpop.permute.xlu0 %790
    %793 = vset.pattern.permute.xlu0 2
    %794 = vperm.xlu0 %793, %v125
    %v795 = vpop.permute.xlu0 %794
    %797 = vset.pattern.permute.xlu0 2
    %798 = vperm.xlu0 %797, %v126
    %v799 = vpop.permute.xlu0 %798
    %801 = vset.pattern.permute.xlu0 2
    %802 = vperm.xlu0 %801, %v127
    %v803 = vpop.permute.xlu0 %802
    %805 = vset.pattern.permute.xlu0 2
    %806 = vperm.xlu0 %805, %v128
    %v807 = vpop.permute.xlu0 %806
    %809 = vset.pattern.permute.xlu0 2
    %810 = vperm.xlu0 %809, %v129
    %v811 = vpop.permute.xlu0 %810
    %813 = vset.pattern.permute.xlu0 2
    %814 = vperm.xlu0 %813, %v130
    %v815 = vpop.permute.xlu0 %814
    %817 = vset.pattern.permute.xlu0 2
    %818 = vperm.xlu0 %817, %v131
    %v819 = vpop.permute.xlu0 %818
    %821 = vset.pattern.permute.xlu0 2
    %822 = vperm.xlu0 %821, %v132
    %v823 = vpop.permute.xlu0 %822
    %825 = vset.pattern.permute.xlu0 2
    %826 = vperm.xlu0 %825, %v133
    %v827 = vpop.permute.xlu0 %826
    %829 = vset.pattern.permute.xlu0 2
    %830 = vperm.xlu0 %829, %v134
    %v831 = vpop.permute.xlu0 %830
    %833 = vset.pattern.permute.xlu0 2
    %834 = vperm.xlu0 %833, %v135
    %v835 = vpop.permute.xlu0 %834
    %837 = vset.pattern.permute.xlu0 2
    %838 = vperm.xlu0 %837, %v136
    %v839 = vpop.permute.xlu0 %838
    %841 = vset.pattern.permute.xlu0 2
    %842 = vperm.xlu0 %841, %v137
    %v843 = vpop.permute.xlu0 %842
    %845 = vset.pattern.permute.xlu0 2
    %846 = vperm.xlu0 %845, %v138
    %v847 = vpop.permute.xlu0 %846
    %849 = vset.pattern.permute.xlu0 2
    %850 = vperm.xlu0 %849, %v139
    %v851 = vpop.permute.xlu0 %850
    %853 = vset.pattern.permute.xlu0 2
    %854 = vperm.xlu0 %853, %v140
    %v855 = vpop.permute.xlu0 %854
    %857 = vset.pattern.permute.xlu0 2
    %858 = vperm.xlu0 %857, %v141
    %v859 = vpop.permute.xlu0 %858
    %861 = vset.pattern.permute.xlu0 2
    %862 = vperm.xlu0 %861, %v142
    %v863 = vpop.permute.xlu0 %862
    %v865 = vlaneseq
    %v866 = vshrl.u32 %v865, 7
    %v867 = vsub.s32 2, %v866
    %v868 = vrot.slane %v143, %v867
    %v869 = vlaneseq
    %v870 = vshrl.u32 %v869, 7
    %v871 = vsub.s32 6, %v870
    %v872 = vrot.slane %v143, %v871
    %v875 = vlaneseq
    %v876 = vshrl.u32 %v875, 7
    %v877 = vsub.s32 2, %v876
    %v878 = vrot.slane %v868, %v877
    %v879 = vlaneseq
    %v880 = vshrl.u32 %v879, 7
    %v881 = vsub.s32 2, %v880
    %v882 = vrot.slane %v872, %v881
    %v883 = vmul.f32 %v739, %v878
    %v884 = vmul.f32 %v739, %v882
    %v885 = vmul.f32 %v743, %v878
    %v886 = vmul.f32 %v743, %v882
    %v887 = vmul.f32 %v747, %v878
    %v888 = vmul.f32 %v747, %v882
    %v889 = vmul.f32 %v751, %v878
    %v890 = vmul.f32 %v751, %v882
    %v891 = vmul.f32 %v755, %v878
    %v892 = vmul.f32 %v755, %v882
    %v893 = vmul.f32 %v759, %v878
    %v894 = vmul.f32 %v759, %v882
    %v895 = vmul.f32 %v763, %v878
    %v896 = vmul.f32 %v763, %v882
    %v897 = vmul.f32 %v767, %v878
    %v898 = vmul.f32 %v767, %v882
    %v899 = vmul.f32 %v771, %v878
    %v900 = vmul.f32 %v771, %v882
    %v901 = vmul.f32 %v775, %v878
    %v902 = vmul.f32 %v775, %v882
    %v903 = vmul.f32 %v779, %v878
    %v904 = vmul.f32 %v779, %v882
    %v905 = vmul.f32 %v783, %v878
    %v906 = vmul.f32 %v783, %v882
    %v907 = vmul.f32 %v787, %v878
    %v908 = vmul.f32 %v787, %v882
    %v909 = vmul.f32 %v791, %v878
    %v910 = vmul.f32 %v791, %v882
    %v911 = vmul.f32 %v795, %v878
    %v912 = vmul.f32 %v795, %v882
    %v913 = vmul.f32 %v799, %v878
    %v914 = vmul.f32 %v799, %v882
    %v915 = vmul.f32 %v803, %v878
    %v916 = vmul.f32 %v803, %v882
    %v917 = vmul.f32 %v807, %v878
    %v918 = vmul.f32 %v807, %v882
    %v919 = vmul.f32 %v811, %v878
    %v920 = vmul.f32 %v811, %v882
    %v921 = vmul.f32 %v815, %v878
    %v922 = vmul.f32 %v815, %v882
    %v923 = vmul.f32 %v819, %v878
    %v924 = vmul.f32 %v819, %v882
    %v925 = vmul.f32 %v823, %v878
    %v926 = vmul.f32 %v823, %v882
    %v927 = vmul.f32 %v827, %v878
    %v928 = vmul.f32 %v827, %v882
    %v929 = vmul.f32 %v831, %v878
    %v930 = vmul.f32 %v831, %v882
    %v931 = vmul.f32 %v835, %v878
    %v932 = vmul.f32 %v835, %v882
    %v933 = vmul.f32 %v839, %v878
    %v934 = vmul.f32 %v839, %v882
    %v935 = vmul.f32 %v843, %v878
    %v936 = vmul.f32 %v843, %v882
    %v937 = vmul.f32 %v847, %v878
    %v938 = vmul.f32 %v847, %v882
    %v939 = vmul.f32 %v851, %v878
    %v940 = vmul.f32 %v851, %v882
    %v941 = vmul.f32 %v855, %v878
    %v942 = vmul.f32 %v855, %v882
    %v943 = vmul.f32 %v859, %v878
    %v944 = vmul.f32 %v859, %v882
    %v945 = vmul.f32 %v863, %v878
    %v946 = vmul.f32 %v863, %v882
    %v947 = vadd.f32 %v673, %v883
    %v948 = vadd.f32 %v674, %v884
    %v949 = vadd.f32 %v675, %v885
    %v950 = vadd.f32 %v676, %v886
    %v951 = vadd.f32 %v677, %v887
    %v952 = vadd.f32 %v678, %v888
    %v953 = vadd.f32 %v679, %v889
    %v954 = vadd.f32 %v680, %v890
    %v955 = vadd.f32 %v681, %v891
    %v956 = vadd.f32 %v682, %v892
    %v957 = vadd.f32 %v683, %v893
    %v958 = vadd.f32 %v684, %v894
    %v959 = vadd.f32 %v685, %v895
    %v960 = vadd.f32 %v686, %v896
    %v961 = vadd.f32 %v687, %v897
    %v962 = vadd.f32 %v688, %v898
    %v963 = vadd.f32 %v689, %v899
    %v964 = vadd.f32 %v690, %v900
    %v965 = vadd.f32 %v691, %v901
    %v966 = vadd.f32 %v692, %v902
    %v967 = vadd.f32 %v693, %v903
    %v968 = vadd.f32 %v694, %v904
    %v969 = vadd.f32 %v695, %v905
    %v970 = vadd.f32 %v696, %v906
    %v971 = vadd.f32 %v697, %v907
    %v972 = vadd.f32 %v698, %v908
    %v973 = vadd.f32 %v699, %v909
    %v974 = vadd.f32 %v700, %v910
    %v975 = vadd.f32 %v701, %v911
    %v976 = vadd.f32 %v702, %v912
    %v977 = vadd.f32 %v703, %v913
    %v978 = vadd.f32 %v704, %v914
    %v979 = vadd.f32 %v705, %v915
    %v980 = vadd.f32 %v706, %v916
    %v981 = vadd.f32 %v707, %v917
    %v982 = vadd.f32 %v708, %v918
    %v983 = vadd.f32 %v709, %v919
    %v984 = vadd.f32 %v710, %v920
    %v985 = vadd.f32 %v711, %v921
    %v986 = vadd.f32 %v712, %v922
    %v987 = vadd.f32 %v713, %v923
    %v988 = vadd.f32 %v714, %v924
    %v989 = vadd.f32 %v715, %v925
    %v990 = vadd.f32 %v716, %v926
    %v991 = vadd.f32 %v717, %v927
    %v992 = vadd.f32 %v718, %v928
    %v993 = vadd.f32 %v719, %v929
    %v994 = vadd.f32 %v720, %v930
    %v995 = vadd.f32 %v721, %v931
    %v996 = vadd.f32 %v722, %v932
    %v997 = vadd.f32 %v723, %v933
    %v998 = vadd.f32 %v724, %v934
    %v999 = vadd.f32 %v725, %v935
    %v1000 = vadd.f32 %v726, %v936
    %v1001 = vadd.f32 %v727, %v937
    %v1002 = vadd.f32 %v728, %v938
    %v1003 = vadd.f32 %v729, %v939
    %v1004 = vadd.f32 %v730, %v940
    %v1005 = vadd.f32 %v731, %v941
    %v1006 = vadd.f32 %v732, %v942
    %v1007 = vadd.f32 %v733, %v943
    %v1008 = vadd.f32 %v734, %v944
    %v1009 = vadd.f32 %v735, %v945
    %v1010 = vadd.f32 %v736, %v946
    %1011 = vset.pattern.permute.xlu0 3
    %1012 = vperm.xlu0 %1011, %v111
    %v1013 = vpop.permute.xlu0 %1012
    %1015 = vset.pattern.permute.xlu0 3
    %1016 = vperm.xlu0 %1015, %v112
    %v1017 = vpop.permute.xlu0 %1016
    %1019 = vset.pattern.permute.xlu0 3
    %1020 = vperm.xlu0 %1019, %v113
    %v1021 = vpop.permute.xlu0 %1020
    %1023 = vset.pattern.permute.xlu0 3
    %1024 = vperm.xlu0 %1023, %v114
    %v1025 = vpop.permute.xlu0 %1024
    %1027 = vset.pattern.permute.xlu0 3
    %1028 = vperm.xlu0 %1027, %v115
    %v1029 = vpop.permute.xlu0 %1028
    %1031 = vset.pattern.permute.xlu0 3
    %1032 = vperm.xlu0 %1031, %v116
    %v1033 = vpop.permute.xlu0 %1032
    %1035 = vset.pattern.permute.xlu0 3
    %1036 = vperm.xlu0 %1035, %v117
    %v1037 = vpop.permute.xlu0 %1036
    %1039 = vset.pattern.permute.xlu0 3
    %1040 = vperm.xlu0 %1039, %v118
    %v1041 = vpop.permute.xlu0 %1040
    %1043 = vset.pattern.permute.xlu0 3
    %1044 = vperm.xlu0 %1043, %v119
    %v1045 = vpop.permute.xlu0 %1044
    %1047 = vset.pattern.permute.xlu0 3
    %1048 = vperm.xlu0 %1047, %v120
    %v1049 = vpop.permute.xlu0 %1048
    %1051 = vset.pattern.permute.xlu0 3
    %1052 = vperm.xlu0 %1051, %v121
    %v1053 = vpop.permute.xlu0 %1052
    %1055 = vset.pattern.permute.xlu0 3
    %1056 = vperm.xlu0 %1055, %v122
    %v1057 = vpop.permute.xlu0 %1056
    %1059 = vset.pattern.permute.xlu0 3
    %1060 = vperm.xlu0 %1059, %v123
    %v1061 = vpop.permute.xlu0 %1060
    %1063 = vset.pattern.permute.xlu0 3
    %1064 = vperm.xlu0 %1063, %v124
    %v1065 = vpop.permute.xlu0 %1064
    %1067 = vset.pattern.permute.xlu0 3
    %1068 = vperm.xlu0 %1067, %v125
    %v1069 = vpop.permute.xlu0 %1068
    %1071 = vset.pattern.permute.xlu0 3
    %1072 = vperm.xlu0 %1071, %v126
    %v1073 = vpop.permute.xlu0 %1072
    %1075 = vset.pattern.permute.xlu0 3
    %1076 = vperm.xlu0 %1075, %v127
    %v1077 = vpop.permute.xlu0 %1076
    %1079 = vset.pattern.permute.xlu0 3
    %1080 = vperm.xlu0 %1079, %v128
    %v1081 = vpop.permute.xlu0 %1080
    %1083 = vset.pattern.permute.xlu0 3
    %1084 = vperm.xlu0 %1083, %v129
    %v1085 = vpop.permute.xlu0 %1084
    %1087 = vset.pattern.permute.xlu0 3
    %1088 = vperm.xlu0 %1087, %v130
    %v1089 = vpop.permute.xlu0 %1088
    %1091 = vset.pattern.permute.xlu0 3
    %1092 = vperm.xlu0 %1091, %v131
    %v1093 = vpop.permute.xlu0 %1092
    %1095 = vset.pattern.permute.xlu0 3
    %1096 = vperm.xlu0 %1095, %v132
    %v1097 = vpop.permute.xlu0 %1096
    %1099 = vset.pattern.permute.xlu0 3
    %1100 = vperm.xlu0 %1099, %v133
    %v1101 = vpop.permute.xlu0 %1100
    %1103 = vset.pattern.permute.xlu0 3
    %1104 = vperm.xlu0 %1103, %v134
    %v1105 = vpop.permute.xlu0 %1104
    %1107 = vset.pattern.permute.xlu0 3
    %1108 = vperm.xlu0 %1107, %v135
    %v1109 = vpop.permute.xlu0 %1108
    %1111 = vset.pattern.permute.xlu0 3
    %1112 = vperm.xlu0 %1111, %v136
    %v1113 = vpop.permute.xlu0 %1112
    %1115 = vset.pattern.permute.xlu0 3
    %1116 = vperm.xlu0 %1115, %v137
    %v1117 = vpop.permute.xlu0 %1116
    %1119 = vset.pattern.permute.xlu0 3
    %1120 = vperm.xlu0 %1119, %v138
    %v1121 = vpop.permute.xlu0 %1120
    %1123 = vset.pattern.permute.xlu0 3
    %1124 = vperm.xlu0 %1123, %v139
    %v1125 = vpop.permute.xlu0 %1124
    %1127 = vset.pattern.permute.xlu0 3
    %1128 = vperm.xlu0 %1127, %v140
    %v1129 = vpop.permute.xlu0 %1128
    %1131 = vset.pattern.permute.xlu0 3
    %1132 = vperm.xlu0 %1131, %v141
    %v1133 = vpop.permute.xlu0 %1132
    %1135 = vset.pattern.permute.xlu0 3
    %1136 = vperm.xlu0 %1135, %v142
    %v1137 = vpop.permute.xlu0 %1136
    %v1139 = vlaneseq
    %v1140 = vshrl.u32 %v1139, 7
    %v1141 = vsub.s32 3, %v1140
    %v1142 = vrot.slane %v143, %v1141
    %v1143 = vlaneseq
    %v1144 = vshrl.u32 %v1143, 7
    %v1145 = vsub.s32 7, %v1144
    %v1146 = vrot.slane %v143, %v1145
    %v1149 = vlaneseq
    %v1150 = vshrl.u32 %v1149, 7
    %v1151 = vsub.s32 3, %v1150
    %v1152 = vrot.slane %v1142, %v1151
    %v1153 = vlaneseq
    %v1154 = vshrl.u32 %v1153, 7
    %v1155 = vsub.s32 3, %v1154
    %v1156 = vrot.slane %v1146, %v1155
    %v1157 = vmul.f32 %v1013, %v1152
    %v1158 = vmul.f32 %v1013, %v1156
    %v1159 = vmul.f32 %v1017, %v1152
    %v1160 = vmul.f32 %v1017, %v1156
    %v1161 = vmul.f32 %v1021, %v1152
    %v1162 = vmul.f32 %v1021, %v1156
    %v1163 = vmul.f32 %v1025, %v1152
    %v1164 = vmul.f32 %v1025, %v1156
    %v1165 = vmul.f32 %v1029, %v1152
    %v1166 = vmul.f32 %v1029, %v1156
    %v1167 = vmul.f32 %v1033, %v1152
    %v1168 = vmul.f32 %v1033, %v1156
    %v1169 = vmul.f32 %v1037, %v1152
    %v1170 = vmul.f32 %v1037, %v1156
    %v1171 = vmul.f32 %v1041, %v1152
    %v1172 = vmul.f32 %v1041, %v1156
    %v1173 = vmul.f32 %v1045, %v1152
    %v1174 = vmul.f32 %v1045, %v1156
    %v1175 = vmul.f32 %v1049, %v1152
    %v1176 = vmul.f32 %v1049, %v1156
    %v1177 = vmul.f32 %v1053, %v1152
    %v1178 = vmul.f32 %v1053, %v1156
    %v1179 = vmul.f32 %v1057, %v1152
    %v1180 = vmul.f32 %v1057, %v1156
    %v1181 = vmul.f32 %v1061, %v1152
    %v1182 = vmul.f32 %v1061, %v1156
    %v1183 = vmul.f32 %v1065, %v1152
    %v1184 = vmul.f32 %v1065, %v1156
    %v1185 = vmul.f32 %v1069, %v1152
    %v1186 = vmul.f32 %v1069, %v1156
    %v1187 = vmul.f32 %v1073, %v1152
    %v1188 = vmul.f32 %v1073, %v1156
    %v1189 = vmul.f32 %v1077, %v1152
    %v1190 = vmul.f32 %v1077, %v1156
    %v1191 = vmul.f32 %v1081, %v1152
    %v1192 = vmul.f32 %v1081, %v1156
    %v1193 = vmul.f32 %v1085, %v1152
    %v1194 = vmul.f32 %v1085, %v1156
    %v1195 = vmul.f32 %v1089, %v1152
    %v1196 = vmul.f32 %v1089, %v1156
    %v1197 = vmul.f32 %v1093, %v1152
    %v1198 = vmul.f32 %v1093, %v1156
    %v1199 = vmul.f32 %v1097, %v1152
    %v1200 = vmul.f32 %v1097, %v1156
    %v1201 = vmul.f32 %v1101, %v1152
    %v1202 = vmul.f32 %v1101, %v1156
    %v1203 = vmul.f32 %v1105, %v1152
    %v1204 = vmul.f32 %v1105, %v1156
    %v1205 = vmul.f32 %v1109, %v1152
    %v1206 = vmul.f32 %v1109, %v1156
    %v1207 = vmul.f32 %v1113, %v1152
    %v1208 = vmul.f32 %v1113, %v1156
    %v1209 = vmul.f32 %v1117, %v1152
    %v1210 = vmul.f32 %v1117, %v1156
    %v1211 = vmul.f32 %v1121, %v1152
    %v1212 = vmul.f32 %v1121, %v1156
    %v1213 = vmul.f32 %v1125, %v1152
    %v1214 = vmul.f32 %v1125, %v1156
    %v1215 = vmul.f32 %v1129, %v1152
    %v1216 = vmul.f32 %v1129, %v1156
    %v1217 = vmul.f32 %v1133, %v1152
    %v1218 = vmul.f32 %v1133, %v1156
    %v1219 = vmul.f32 %v1137, %v1152
    %v1220 = vmul.f32 %v1137, %v1156
    %v1221 = vadd.f32 %v947, %v1157
    %v1222 = vadd.f32 %v948, %v1158
    %v1223 = vadd.f32 %v949, %v1159
    %v1224 = vadd.f32 %v950, %v1160
    %v1225 = vadd.f32 %v951, %v1161
    %v1226 = vadd.f32 %v952, %v1162
    %v1227 = vadd.f32 %v953, %v1163
    %v1228 = vadd.f32 %v954, %v1164
    %v1229 = vadd.f32 %v955, %v1165
    %v1230 = vadd.f32 %v956, %v1166
    %v1231 = vadd.f32 %v957, %v1167
    %v1232 = vadd.f32 %v958, %v1168
    %v1233 = vadd.f32 %v959, %v1169
    %v1234 = vadd.f32 %v960, %v1170
    %v1235 = vadd.f32 %v961, %v1171
    %v1236 = vadd.f32 %v962, %v1172
    %v1237 = vadd.f32 %v963, %v1173
    %v1238 = vadd.f32 %v964, %v1174
    %v1239 = vadd.f32 %v965, %v1175
    %v1240 = vadd.f32 %v966, %v1176
    %v1241 = vadd.f32 %v967, %v1177
    %v1242 = vadd.f32 %v968, %v1178
    %v1243 = vadd.f32 %v969, %v1179
    %v1244 = vadd.f32 %v970, %v1180
    %v1245 = vadd.f32 %v971, %v1181
    %v1246 = vadd.f32 %v972, %v1182
    %v1247 = vadd.f32 %v973, %v1183
    %v1248 = vadd.f32 %v974, %v1184
    %v1249 = vadd.f32 %v975, %v1185
    %v1250 = vadd.f32 %v976, %v1186
    %v1251 = vadd.f32 %v977, %v1187
    %v1252 = vadd.f32 %v978, %v1188
    %v1253 = vadd.f32 %v979, %v1189
    %v1254 = vadd.f32 %v980, %v1190
    %v1255 = vadd.f32 %v981, %v1191
    %v1256 = vadd.f32 %v982, %v1192
    %v1257 = vadd.f32 %v983, %v1193
    %v1258 = vadd.f32 %v984, %v1194
    %v1259 = vadd.f32 %v985, %v1195
    %v1260 = vadd.f32 %v986, %v1196
    %v1261 = vadd.f32 %v987, %v1197
    %v1262 = vadd.f32 %v988, %v1198
    %v1263 = vadd.f32 %v989, %v1199
    %v1264 = vadd.f32 %v990, %v1200
    %v1265 = vadd.f32 %v991, %v1201
    %v1266 = vadd.f32 %v992, %v1202
    %v1267 = vadd.f32 %v993, %v1203
    %v1268 = vadd.f32 %v994, %v1204
    %v1269 = vadd.f32 %v995, %v1205
    %v1270 = vadd.f32 %v996, %v1206
    %v1271 = vadd.f32 %v997, %v1207
    %v1272 = vadd.f32 %v998, %v1208
    %v1273 = vadd.f32 %v999, %v1209
    %v1274 = vadd.f32 %v1000, %v1210
    %v1275 = vadd.f32 %v1001, %v1211
    %v1276 = vadd.f32 %v1002, %v1212
    %v1277 = vadd.f32 %v1003, %v1213
    %v1278 = vadd.f32 %v1004, %v1214
    %v1279 = vadd.f32 %v1005, %v1215
    %v1280 = vadd.f32 %v1006, %v1216
    %v1281 = vadd.f32 %v1007, %v1217
    %v1282 = vadd.f32 %v1008, %v1218
    %v1283 = vadd.f32 %v1009, %v1219
    %v1284 = vadd.f32 %v1010, %v1220
    %v1285 = vpack.c.bf16 %v1223, %v1221
    %v1286 = vpack.c.bf16 %v1224, %v1222
    %v1287 = vpack.c.bf16 %v1227, %v1225
    %v1288 = vpack.c.bf16 %v1228, %v1226
    %v1289 = vpack.c.bf16 %v1231, %v1229
    %v1290 = vpack.c.bf16 %v1232, %v1230
    %v1291 = vpack.c.bf16 %v1235, %v1233
    %v1292 = vpack.c.bf16 %v1236, %v1234
    %v1293 = vpack.c.bf16 %v1239, %v1237
    %v1294 = vpack.c.bf16 %v1240, %v1238
    %v1295 = vpack.c.bf16 %v1243, %v1241
    %v1296 = vpack.c.bf16 %v1244, %v1242
    %v1297 = vpack.c.bf16 %v1247, %v1245
    %v1298 = vpack.c.bf16 %v1248, %v1246
    %v1299 = vpack.c.bf16 %v1251, %v1249
    %v1300 = vpack.c.bf16 %v1252, %v1250
    %v1301 = vpack.c.bf16 %v1255, %v1253
    %v1302 = vpack.c.bf16 %v1256, %v1254
    %v1303 = vpack.c.bf16 %v1259, %v1257
    %v1304 = vpack.c.bf16 %v1260, %v1258
    %v1305 = vpack.c.bf16 %v1263, %v1261
    %v1306 = vpack.c.bf16 %v1264, %v1262
    %v1307 = vpack.c.bf16 %v1267, %v1265
    %v1308 = vpack.c.bf16 %v1268, %v1266
    %v1309 = vpack.c.bf16 %v1271, %v1269
    %v1310 = vpack.c.bf16 %v1272, %v1270
    %v1311 = vpack.c.bf16 %v1275, %v1273
    %v1312 = vpack.c.bf16 %v1276, %v1274
    %v1313 = vpack.c.bf16 %v1279, %v1277
    %v1314 = vpack.c.bf16 %v1280, %v1278
    %v1315 = vpack.c.bf16 %v1283, %v1281
    %v1316 = vpack.c.bf16 %v1284, %v1282
    %v1317 = vld [vmem:[#allocation2] sm:$0xff]
    %v1318 = vld [vmem:[#allocation2 + $0x8] sm:$0xff]
    %v1319 = vld [vmem:[#allocation2 + $0x10] sm:$0xff]
    %v1320 = vld [vmem:[#allocation2 + $0x18] sm:$0xff]
    %v1321 = vld [vmem:[#allocation2 + $0x20] sm:$0xff]
    %v1322 = vld [vmem:[#allocation2 + $0x28] sm:$0xff]
    %v1323 = vld [vmem:[#allocation2 + $0x30] sm:$0xff]
    %v1324 = vld [vmem:[#allocation2 + $0x38] sm:$0xff]
    %v1325 = vld [vmem:[#allocation2 + $0x40] sm:$0xff]
    %v1326 = vld [vmem:[#allocation2 + $0x48] sm:$0xff]
    %v1327 = vld [vmem:[#allocation2 + $0x50] sm:$0xff]
    %v1328 = vld [vmem:[#allocation2 + $0x58] sm:$0xff]
    %v1329 = vld [vmem:[#allocation2 + $0x60] sm:$0xff]
    %v1330 = vld [vmem:[#allocation2 + $0x68] sm:$0xff]
    %v1331 = vld [vmem:[#allocation2 + $0x70] sm:$0xff]
    %v1332 = vld [vmem:[#allocation2 + $0x78] sm:$0xff]
    %v1333 = vld [vmem:[#allocation2 + $0x80] sm:$0xff]
    %v1334 = vld [vmem:[#allocation2 + $0x88] sm:$0xff]
    %v1335 = vld [vmem:[#allocation2 + $0x90] sm:$0xff]
    %v1336 = vld [vmem:[#allocation2 + $0x98] sm:$0xff]
    %v1337 = vld [vmem:[#allocation2 + $0xa0] sm:$0xff]
    %v1338 = vld [vmem:[#allocation2 + $0xa8] sm:$0xff]
    %v1339 = vld [vmem:[#allocation2 + $0xb0] sm:$0xff]
    %v1340 = vld [vmem:[#allocation2 + $0xb8] sm:$0xff]
    %v1341 = vld [vmem:[#allocation2 + $0xc0] sm:$0xff]
    %v1342 = vld [vmem:[#allocation2 + $0xc8] sm:$0xff]
    %v1343 = vld [vmem:[#allocation2 + $0xd0] sm:$0xff]
    %v1344 = vld [vmem:[#allocation2 + $0xd8] sm:$0xff]
    %v1345 = vld [vmem:[#allocation2 + $0xe0] sm:$0xff]
    %v1346 = vld [vmem:[#allocation2 + $0xe8] sm:$0xff]
    %v1347 = vld [vmem:[#allocation2 + $0xf0] sm:$0xff]
    %v1348 = vld [vmem:[#allocation2 + $0xf8] sm:$0xff]
    %v1349 = vld [vmem:[%s4] sm:$0x3]
    %v1351 = vlaneseq
    %v1352 = vshrl.u32 %v1351, 7
    %v1353 = vsub.s32 0, %v1352
    %v1354 = vrot.slane %v1349, %v1353
    %v1355 = vlaneseq
    %v1356 = vshrl.u32 %v1355, 7
    %v1357 = vsub.s32 1, %v1356
    %v1358 = vrot.slane %v1349, %v1357
    %v1393 = vunpack.c.l.b16 %v1317
    %v1394 = vunpack.c.h.b16 %v1317
    %v1395 = vunpack.c.l.b16 %v1318
    %v1396 = vunpack.c.h.b16 %v1318
    %v1397 = vunpack.c.l.b16 %v1319
    %v1398 = vunpack.c.h.b16 %v1319
    %v1399 = vunpack.c.l.b16 %v1320
    %v1400 = vunpack.c.h.b16 %v1320
    %v1401 = vunpack.c.l.b16 %v1321
    %v1402 = vunpack.c.h.b16 %v1321
    %v1403 = vunpack.c.l.b16 %v1322
    %v1404 = vunpack.c.h.b16 %v1322
    %v1405 = vunpack.c.l.b16 %v1323
    %v1406 = vunpack.c.h.b16 %v1323
    %v1407 = vunpack.c.l.b16 %v1324
    %v1408 = vunpack.c.h.b16 %v1324
    %v1409 = vunpack.c.l.b16 %v1325
    %v1410 = vunpack.c.h.b16 %v1325
    %v1411 = vunpack.c.l.b16 %v1326
    %v1412 = vunpack.c.h.b16 %v1326
    %v1413 = vunpack.c.l.b16 %v1327
    %v1414 = vunpack.c.h.b16 %v1327
    %v1415 = vunpack.c.l.b16 %v1328
    %v1416 = vunpack.c.h.b16 %v1328
    %v1417 = vunpack.c.l.b16 %v1329
    %v1418 = vunpack.c.h.b16 %v1329
    %v1419 = vunpack.c.l.b16 %v1330
    %v1420 = vunpack.c.h.b16 %v1330
    %v1421 = vunpack.c.l.b16 %v1331
    %v1422 = vunpack.c.h.b16 %v1331
    %v1423 = vunpack.c.l.b16 %v1332
    %v1424 = vunpack.c.h.b16 %v1332
    %v1425 = vunpack.c.l.b16 %v1333
    %v1426 = vunpack.c.h.b16 %v1333
    %v1427 = vunpack.c.l.b16 %v1334
    %v1428 = vunpack.c.h.b16 %v1334
    %v1429 = vunpack.c.l.b16 %v1335
    %v1430 = vunpack.c.h.b16 %v1335
    %v1431 = vunpack.c.l.b16 %v1336
    %v1432 = vunpack.c.h.b16 %v1336
    %v1433 = vunpack.c.l.b16 %v1337
    %v1434 = vunpack.c.h.b16 %v1337
    %v1435 = vunpack.c.l.b16 %v1338
    %v1436 = vunpack.c.h.b16 %v1338
    %v1437 = vunpack.c.l.b16 %v1339
    %v1438 = vunpack.c.h.b16 %v1339
    %v1439 = vunpack.c.l.b16 %v1340
    %v1440 = vunpack.c.h.b16 %v1340
    %v1441 = vunpack.c.l.b16 %v1341
    %v1442 = vunpack.c.h.b16 %v1341
    %v1443 = vunpack.c.l.b16 %v1342
    %v1444 = vunpack.c.h.b16 %v1342
    %v1445 = vunpack.c.l.b16 %v1343
    %v1446 = vunpack.c.h.b16 %v1343
    %v1447 = vunpack.c.l.b16 %v1344
    %v1448 = vunpack.c.h.b16 %v1344
    %v1449 = vunpack.c.l.b16 %v1345
    %v1450 = vunpack.c.h.b16 %v1345
    %v1451 = vunpack.c.l.b16 %v1346
    %v1452 = vunpack.c.h.b16 %v1346
    %v1453 = vunpack.c.l.b16 %v1347
    %v1454 = vunpack.c.h.b16 %v1347
    %v1455 = vunpack.c.l.b16 %v1348
    %v1456 = vunpack.c.h.b16 %v1348
    %v1457 = vpack.c.b16 %v1395, %v1393
    %v1458 = vpack.c.b16 %v1396, %v1394
    %v1459 = vpack.c.b16 %v1399, %v1397
    %v1460 = vpack.c.b16 %v1400, %v1398
    %v1461 = vpack.c.b16 %v1403, %v1401
    %v1462 = vpack.c.b16 %v1404, %v1402
    %v1463 = vpack.c.b16 %v1407, %v1405
    %v1464 = vpack.c.b16 %v1408, %v1406
    %v1465 = vpack.c.b16 %v1411, %v1409
    %v1466 = vpack.c.b16 %v1412, %v1410
    %v1467 = vpack.c.b16 %v1415, %v1413
    %v1468 = vpack.c.b16 %v1416, %v1414
    %v1469 = vpack.c.b16 %v1419, %v1417
    %v1470 = vpack.c.b16 %v1420, %v1418
    %v1471 = vpack.c.b16 %v1423, %v1421
    %v1472 = vpack.c.b16 %v1424, %v1422
    %v1473 = vpack.c.b16 %v1427, %v1425
    %v1474 = vpack.c.b16 %v1428, %v1426
    %v1475 = vpack.c.b16 %v1431, %v1429
    %v1476 = vpack.c.b16 %v1432, %v1430
    %v1477 = vpack.c.b16 %v1435, %v1433
    %v1478 = vpack.c.b16 %v1436, %v1434
    %v1479 = vpack.c.b16 %v1439, %v1437
    %v1480 = vpack.c.b16 %v1440, %v1438
    %v1481 = vpack.c.b16 %v1443, %v1441
    %v1482 = vpack.c.b16 %v1444, %v1442
    %v1483 = vpack.c.b16 %v1447, %v1445
    %v1484 = vpack.c.b16 %v1448, %v1446
    %v1485 = vpack.c.b16 %v1451, %v1449
    %v1486 = vpack.c.b16 %v1452, %v1450
    %v1487 = vpack.c.b16 %v1455, %v1453
    %v1488 = vpack.c.b16 %v1456, %v1454
    %1521 = vmatprep.subr.bf16.mxu0 %v1458
    %1522 = vmatpush1.bf16.msra.mxu0 %v1457
    %1523 = vmatprep.subr.bf16.mxu0 %v1460
    %1524 = vmatpush1.bf16.msra.mxu0 %v1459
    %1525 = vmatprep.subr.bf16.mxu0 %v1462
    %1526 = vmatpush1.bf16.msra.mxu0 %v1461
    %1527 = vmatprep.subr.bf16.mxu0 %v1464
    %1528 = vmatpush1.bf16.msra.mxu0 %v1463
    %1529 = vmatprep.subr.bf16.mxu0 %v1466
    %1530 = vmatpush1.bf16.msra.mxu0 %v1465
    %1531 = vmatprep.subr.bf16.mxu0 %v1468
    %1532 = vmatpush1.bf16.msra.mxu0 %v1467
    %1533 = vmatprep.subr.bf16.mxu0 %v1470
    %1534 = vmatpush1.bf16.msra.mxu0 %v1469
    %1535 = vmatprep.subr.bf16.mxu0 %v1472
    %1536 = vmatpush1.bf16.msra.mxu0 %v1471
    %1537 = vmatprep.subr.bf16.mxu0 %v1474
    %1538 = vmatpush1.bf16.msra.mxu0 %v1473
    %1539 = vmatprep.subr.bf16.mxu0 %v1476
    %1540 = vmatpush1.bf16.msra.mxu0 %v1475
    %1541 = vmatprep.subr.bf16.mxu0 %v1478
    %1542 = vmatpush1.bf16.msra.mxu0 %v1477
    %1543 = vmatprep.subr.bf16.mxu0 %v1480
    %1544 = vmatpush1.bf16.msra.mxu0 %v1479
    %1545 = vmatprep.subr.bf16.mxu0 %v1482
    %1546 = vmatpush1.bf16.msra.mxu0 %v1481
    %1547 = vmatprep.subr.bf16.mxu0 %v1484
    %1548 = vmatpush1.bf16.msra.mxu0 %v1483
    %1549 = vmatprep.subr.bf16.mxu0 %v1486
    %1550 = vmatpush1.bf16.msra.mxu0 %v1485
    %1551 = vmatprep.subr.bf16.mxu0 %v1488
    %1552 = vmatpush1.bf16.msra.mxu0 %v1487
    %1553 = vmatprep.mubr.bf16.mxu0 %v1286
    %1554 = vmatmul.mubr.bf16.gmra.mrb[0].mxu0 %v1285
    %v1555 = vpop.f32.mrb[0].mxu0
    %v1556 = vadd.f32 %v1354, %v1555
    %v1557 = vpop.f32.mrb[0].mxu0
    %v1558 = vadd.f32 %v1358, %v1557
    %v1559 = vpop.f32.mrb[0].mxu0
    %v1560 = vadd.f32 %v1354, %v1559
    %v1561 = vpop.f32.mrb[0].mxu0
    %v1562 = vadd.f32 %v1358, %v1561
    %1563 = vmatprep.mubr.bf16.mxu0 %v1288
    %1564 = vmatmul.mubr.bf16.gmra.mrb[0].mxu0 %v1287
    %v1565 = vpop.f32.mrb[0].mxu0
    %v1566 = vadd.f32 %v1354, %v1565
    %v1567 = vpop.f32.mrb[0].mxu0
    %v1568 = vadd.f32 %v1358, %v1567
    %v1569 = vpop.f32.mrb[0].mxu0
    %v1570 = vadd.f32 %v1354, %v1569
    %v1571 = vpop.f32.mrb[0].mxu0
    %v1572 = vadd.f32 %v1358, %v1571
    %1573 = vmatprep.mubr.bf16.mxu0 %v1290
    %1574 = vmatmul.mubr.bf16.gmra.mrb[0].mxu0 %v1289
    %v1575 = vpop.f32.mrb[0].mxu0
    %v1576 = vadd.f32 %v1354, %v1575
    %v1577 = vpop.f32.mrb[0].mxu0
    %v1578 = vadd.f32 %v1358, %v1577
    %v1579 = vpop.f32.mrb[0].mxu0
    %v1580 = vadd.f32 %v1354, %v1579
    %v1581 = vpop.f32.mrb[0].mxu0
    %v1582 = vadd.f32 %v1358, %v1581
    %1583 = vmatprep.mubr.bf16.mxu0 %v1292
    %1584 = vmatmul.mubr.bf16.gmra.mrb[0].mxu0 %v1291
    %v1585 = vpop.f32.mrb[0].mxu0
    %v1586 = vadd.f32 %v1354, %v1585
    %v1587 = vpop.f32.mrb[0].mxu0
    %v1588 = vadd.f32 %v1358, %v1587
    %v1589 = vpop.f32.mrb[0].mxu0
    %v1590 = vadd.f32 %v1354, %v1589
    %v1591 = vpop.f32.mrb[0].mxu0
    %v1592 = vadd.f32 %v1358, %v1591
    %1593 = vmatprep.mubr.bf16.mxu0 %v1294
    %1594 = vmatmul.mubr.bf16.gmra.mrb[0].mxu0 %v1293
    %v1595 = vpop.f32.mrb[0].mxu0
    %v1596 = vadd.f32 %v1354, %v1595
    %v1597 = vpop.f32.mrb[0].mxu0
    %v1598 = vadd.f32 %v1358, %v1597
    %v1599 = vpop.f32.mrb[0].mxu0
    %v1600 = vadd.f32 %v1354, %v1599
    %v1601 = vpop.f32.mrb[0].mxu0
    %v1602 = vadd.f32 %v1358, %v1601
    %1603 = vmatprep.mubr.bf16.mxu0 %v1296
    %1604 = vmatmul.mubr.bf16.gmra.mrb[0].mxu0 %v1295
    %v1605 = vpop.f32.mrb[0].mxu0
    %v1606 = vadd.f32 %v1354, %v1605
    %v1607 = vpop.f32.mrb[0].mxu0
    %v1608 = vadd.f32 %v1358, %v1607
    %v1609 = vpop.f32.mrb[0].mxu0
    %v1610 = vadd.f32 %v1354, %v1609
    %v1611 = vpop.f32.mrb[0].mxu0
    %v1612 = vadd.f32 %v1358, %v1611
    %1613 = vmatprep.mubr.bf16.mxu0 %v1298
    %1614 = vmatmul.mubr.bf16.gmra.mrb[0].mxu0 %v1297
    %v1615 = vpop.f32.mrb[0].mxu0
    %v1616 = vadd.f32 %v1354, %v1615
    %v1617 = vpop.f32.mrb[0].mxu0
    %v1618 = vadd.f32 %v1358, %v1617
    %v1619 = vpop.f32.mrb[0].mxu0
    %v1620 = vadd.f32 %v1354, %v1619
    %v1621 = vpop.f32.mrb[0].mxu0
    %v1622 = vadd.f32 %v1358, %v1621
    %1623 = vmatprep.mubr.bf16.mxu0 %v1300
    %1624 = vmatmul.mubr.bf16.gmra.mrb[0].mxu0 %v1299
    %v1625 = vpop.f32.mrb[0].mxu0
    %v1626 = vadd.f32 %v1354, %v1625
    %v1627 = vpop.f32.mrb[0].mxu0
    %v1628 = vadd.f32 %v1358, %v1627
    %v1629 = vpop.f32.mrb[0].mxu0
    %v1630 = vadd.f32 %v1354, %v1629
    %v1631 = vpop.f32.mrb[0].mxu0
    %v1632 = vadd.f32 %v1358, %v1631
    %1633 = vmatprep.mubr.bf16.mxu0 %v1302
    %1634 = vmatmul.mubr.bf16.gmra.mrb[0].mxu0 %v1301
    %v1635 = vpop.f32.mrb[0].mxu0
    %v1636 = vadd.f32 %v1354, %v1635
    %v1637 = vpop.f32.mrb[0].mxu0
    %v1638 = vadd.f32 %v1358, %v1637
    %v1639 = vpop.f32.mrb[0].mxu0
    %v1640 = vadd.f32 %v1354, %v1639
    %v1641 = vpop.f32.mrb[0].mxu0
    %v1642 = vadd.f32 %v1358, %v1641
    %1643 = vmatprep.mubr.bf16.mxu0 %v1304
    %1644 = vmatmul.mubr.bf16.gmra.mrb[0].mxu0 %v1303
    %v1645 = vpop.f32.mrb[0].mxu0
    %v1646 = vadd.f32 %v1354, %v1645
    %v1647 = vpop.f32.mrb[0].mxu0
    %v1648 = vadd.f32 %v1358, %v1647
    %v1649 = vpop.f32.mrb[0].mxu0
    %v1650 = vadd.f32 %v1354, %v1649
    %v1651 = vpop.f32.mrb[0].mxu0
    %v1652 = vadd.f32 %v1358, %v1651
    %1653 = vmatprep.mubr.bf16.mxu0 %v1306
    %1654 = vmatmul.mubr.bf16.gmra.mrb[0].mxu0 %v1305
    %v1655 = vpop.f32.mrb[0].mxu0
    %v1656 = vadd.f32 %v1354, %v1655
    %v1657 = vpop.f32.mrb[0].mxu0
    %v1658 = vadd.f32 %v1358, %v1657
    %v1659 = vpop.f32.mrb[0].mxu0
    %v1660 = vadd.f32 %v1354, %v1659
    %v1661 = vpop.f32.mrb[0].mxu0
    %v1662 = vadd.f32 %v1358, %v1661
    %1663 = vmatprep.mubr.bf16.mxu0 %v1308
    %1664 = vmatmul.mubr.bf16.gmra.mrb[0].mxu0 %v1307
    %v1665 = vpop.f32.mrb[0].mxu0
    %v1666 = vadd.f32 %v1354, %v1665
    %v1667 = vpop.f32.mrb[0].mxu0
    %v1668 = vadd.f32 %v1358, %v1667
    %v1669 = vpop.f32.mrb[0].mxu0
    %v1670 = vadd.f32 %v1354, %v1669
    %v1671 = vpop.f32.mrb[0].mxu0
    %v1672 = vadd.f32 %v1358, %v1671
    %1673 = vmatprep.mubr.bf16.mxu0 %v1310
    %1674 = vmatmul.mubr.bf16.gmra.mrb[0].mxu0 %v1309
    %v1675 = vpop.f32.mrb[0].mxu0
    %v1676 = vadd.f32 %v1354, %v1675
    %v1677 = vpop.f32.mrb[0].mxu0
    %v1678 = vadd.f32 %v1358, %v1677
    %v1679 = vpop.f32.mrb[0].mxu0
    %v1680 = vadd.f32 %v1354, %v1679
    %v1681 = vpop.f32.mrb[0].mxu0
    %v1682 = vadd.f32 %v1358, %v1681
    %1683 = vmatprep.mubr.bf16.mxu0 %v1312
    %1684 = vmatmul.mubr.bf16.gmra.mrb[0].mxu0 %v1311
    %v1685 = vpop.f32.mrb[0].mxu0
    %v1686 = vadd.f32 %v1354, %v1685
    %v1687 = vpop.f32.mrb[0].mxu0
    %v1688 = vadd.f32 %v1358, %v1687
    %v1689 = vpop.f32.mrb[0].mxu0
    %v1690 = vadd.f32 %v1354, %v1689
    %v1691 = vpop.f32.mrb[0].mxu0
    %v1692 = vadd.f32 %v1358, %v1691
    %1693 = vmatprep.mubr.bf16.mxu0 %v1314
    %1694 = vmatmul.mubr.bf16.gmra.mrb[0].mxu0 %v1313
    %v1695 = vpop.f32.mrb[0].mxu0
    %v1696 = vadd.f32 %v1354, %v1695
    %v1697 = vpop.f32.mrb[0].mxu0
    %v1698 = vadd.f32 %v1358, %v1697
    %v1699 = vpop.f32.mrb[0].mxu0
    %v1700 = vadd.f32 %v1354, %v1699
    %v1701 = vpop.f32.mrb[0].mxu0
    %v1702 = vadd.f32 %v1358, %v1701
    %1703 = vmatprep.mubr.bf16.mxu0 %v1316
    %1704 = vmatmul.mubr.bf16.gmra.mrb[0].mxu0 %v1315
    %v1705 = vpop.f32.mrb[0].mxu0
    %v1706 = vadd.f32 %v1354, %v1705
    %v1707 = vpop.f32.mrb[0].mxu0
    %v1708 = vadd.f32 %v1358, %v1707
    %v1709 = vpop.f32.mrb[0].mxu0
    %v1710 = vadd.f32 %v1354, %v1709
    %v1711 = vpop.f32.mrb[0].mxu0
    %v1712 = vadd.f32 %v1358, %v1711
    %1713 = vdwg.mxu0
    %v1714 = vpack.c.bf16 %v1560, %v1556
    %v1715 = vpack.c.bf16 %v1562, %v1558
    %v1716 = vpack.c.bf16 %v1570, %v1566
    %v1717 = vpack.c.bf16 %v1572, %v1568
    %v1718 = vpack.c.bf16 %v1580, %v1576
    %v1719 = vpack.c.bf16 %v1582, %v1578
    %v1720 = vpack.c.bf16 %v1590, %v1586
    %v1721 = vpack.c.bf16 %v1592, %v1588
    %v1722 = vpack.c.bf16 %v1600, %v1596
    %v1723 = vpack.c.bf16 %v1602, %v1598
    %v1724 = vpack.c.bf16 %v1610, %v1606
    %v1725 = vpack.c.bf16 %v1612, %v1608
    %v1726 = vpack.c.bf16 %v1620, %v1616
    %v1727 = vpack.c.bf16 %v1622, %v1618
    %v1728 = vpack.c.bf16 %v1630, %v1626
    %v1729 = vpack.c.bf16 %v1632, %v1628
    %v1730 = vpack.c.bf16 %v1640, %v1636
    %v1731 = vpack.c.bf16 %v1642, %v1638
    %v1732 = vpack.c.bf16 %v1650, %v1646
    %v1733 = vpack.c.bf16 %v1652, %v1648
    %v1734 = vpack.c.bf16 %v1660, %v1656
    %v1735 = vpack.c.bf16 %v1662, %v1658
    %v1736 = vpack.c.bf16 %v1670, %v1666
    %v1737 = vpack.c.bf16 %v1672, %v1668
    %v1738 = vpack.c.bf16 %v1680, %v1676
    %v1739 = vpack.c.bf16 %v1682, %v1678
    %v1740 = vpack.c.bf16 %v1690, %v1686
    %v1741 = vpack.c.bf16 %v1692, %v1688
    %v1742 = vpack.c.bf16 %v1700, %v1696
    %v1743 = vpack.c.bf16 %v1702, %v1698
    %v1744 = vpack.c.bf16 %v1710, %v1706
    %v1745 = vpack.c.bf16 %v1712, %v1708
    %v1746 = vld [vmem:[#allocation4] sm:$0xff]
    %v1747 = vld [vmem:[#allocation4 + $0x8] sm:$0xff]
    %v1748 = vld [vmem:[#allocation4 + $0x10] sm:$0xff]
    %v1749 = vld [vmem:[#allocation4 + $0x18] sm:$0xff]
    %v1750 = vld [vmem:[#allocation4 + $0x20] sm:$0xff]
    %v1751 = vld [vmem:[#allocation4 + $0x28] sm:$0xff]
    %v1752 = vld [vmem:[#allocation4 + $0x30] sm:$0xff]
    %v1753 = vld [vmem:[#allocation4 + $0x38] sm:$0xff]
    %v1754 = vld [vmem:[#allocation4 + $0x40] sm:$0xff]
    %v1755 = vld [vmem:[#allocation4 + $0x48] sm:$0xff]
    %v1756 = vld [vmem:[#allocation4 + $0x50] sm:$0xff]
    %v1757 = vld [vmem:[#allocation4 + $0x58] sm:$0xff]
    %v1758 = vld [vmem:[#allocation4 + $0x60] sm:$0xff]
    %v1759 = vld [vmem:[#allocation4 + $0x68] sm:$0xff]
    %v1760 = vld [vmem:[#allocation4 + $0x70] sm:$0xff]
    %v1761 = vld [vmem:[#allocation4 + $0x78] sm:$0xff]
    %v1762 = vld [vmem:[#allocation4 + $0x80] sm:$0xff]
    %v1763 = vld [vmem:[#allocation4 + $0x88] sm:$0xff]
    %v1764 = vld [vmem:[#allocation4 + $0x90] sm:$0xff]
    %v1765 = vld [vmem:[#allocation4 + $0x98] sm:$0xff]
    %v1766 = vld [vmem:[#allocation4 + $0xa0] sm:$0xff]
    %v1767 = vld [vmem:[#allocation4 + $0xa8] sm:$0xff]
    %v1768 = vld [vmem:[#allocation4 + $0xb0] sm:$0xff]
    %v1769 = vld [vmem:[#allocation4 + $0xb8] sm:$0xff]
    %v1770 = vld [vmem:[#allocation4 + $0xc0] sm:$0xff]
    %v1771 = vld [vmem:[#allocation4 + $0xc8] sm:$0xff]
    %v1772 = vld [vmem:[#allocation4 + $0xd0] sm:$0xff]
    %v1773 = vld [vmem:[#allocation4 + $0xd8] sm:$0xff]
    %v1774 = vld [vmem:[#allocation4 + $0xe0] sm:$0xff]
    %v1775 = vld [vmem:[#allocation4 + $0xe8] sm:$0xff]
    %v1776 = vld [vmem:[#allocation4 + $0xf0] sm:$0xff]
    %v1777 = vld [vmem:[#allocation4 + $0xf8] sm:$0xff]
    %v1778 = vld [vmem:[%s6] sm:$0x3]
    %v1780 = vlaneseq
    %v1781 = vshrl.u32 %v1780, 7
    %v1782 = vsub.s32 0, %v1781
    %v1783 = vrot.slane %v1778, %v1782
    %v1784 = vlaneseq
    %v1785 = vshrl.u32 %v1784, 7
    %v1786 = vsub.s32 1, %v1785
    %v1787 = vrot.slane %v1778, %v1786
    %v1822 = vunpack.c.l.b16 %v1746
    %v1823 = vunpack.c.h.b16 %v1746
    %v1824 = vunpack.c.l.b16 %v1747
    %v1825 = vunpack.c.h.b16 %v1747
    %v1826 = vunpack.c.l.b16 %v1748
    %v1827 = vunpack.c.h.b16 %v1748
    %v1828 = vunpack.c.l.b16 %v1749
    %v1829 = vunpack.c.h.b16 %v1749
    %v1830 = vunpack.c.l.b16 %v1750
    %v1831 = vunpack.c.h.b16 %v1750
    %v1832 = vunpack.c.l.b16 %v1751
    %v1833 = vunpack.c.h.b16 %v1751
    %v1834 = vunpack.c.l.b16 %v1752
    %v1835 = vunpack.c.h.b16 %v1752
    %v1836 = vunpack.c.l.b16 %v1753
    %v1837 = vunpack.c.h.b16 %v1753
    %v1838 = vunpack.c.l.b16 %v1754
    %v1839 = vunpack.c.h.b16 %v1754
    %v1840 = vunpack.c.l.b16 %v1755
    %v1841 = vunpack.c.h.b16 %v1755
    %v1842 = vunpack.c.l.b16 %v1756
    %v1843 = vunpack.c.h.b16 %v1756
    %v1844 = vunpack.c.l.b16 %v1757
    %v1845 = vunpack.c.h.b16 %v1757
    %v1846 = vunpack.c.l.b16 %v1758
    %v1847 = vunpack.c.h.b16 %v1758
    %v1848 = vunpack.c.l.b16 %v1759
    %v1849 = vunpack.c.h.b16 %v1759
    %v1850 = vunpack.c.l.b16 %v1760
    %v1851 = vunpack.c.h.b16 %v1760
    %v1852 = vunpack.c.l.b16 %v1761
    %v1853 = vunpack.c.h.b16 %v1761
    %v1854 = vunpack.c.l.b16 %v1762
    %v1855 = vunpack.c.h.b16 %v1762
    %v1856 = vunpack.c.l.b16 %v1763
    %v1857 = vunpack.c.h.b16 %v1763
    %v1858 = vunpack.c.l.b16 %v1764
    %v1859 = vunpack.c.h.b16 %v1764
    %v1860 = vunpack.c.l.b16 %v1765
    %v1861 = vunpack.c.h.b16 %v1765
    %v1862 = vunpack.c.l.b16 %v1766
    %v1863 = vunpack.c.h.b16 %v1766
    %v1864 = vunpack.c.l.b16 %v1767
    %v1865 = vunpack.c.h.b16 %v1767
    %v1866 = vunpack.c.l.b16 %v1768
    %v1867 = vunpack.c.h.b16 %v1768
    %v1868 = vunpack.c.l.b16 %v1769
    %v1869 = vunpack.c.h.b16 %v1769
    %v1870 = vunpack.c.l.b16 %v1770
    %v1871 = vunpack.c.h.b16 %v1770
    %v1872 = vunpack.c.l.b16 %v1771
    %v1873 = vunpack.c.h.b16 %v1771
    %v1874 = vunpack.c.l.b16 %v1772
    %v1875 = vunpack.c.h.b16 %v1772
    %v1876 = vunpack.c.l.b16 %v1773
    %v1877 = vunpack.c.h.b16 %v1773
    %v1878 = vunpack.c.l.b16 %v1774
    %v1879 = vunpack.c.h.b16 %v1774
    %v1880 = vunpack.c.l.b16 %v1775
    %v1881 = vunpack.c.h.b16 %v1775
    %v1882 = vunpack.c.l.b16 %v1776
    %v1883 = vunpack.c.h.b16 %v1776
    %v1884 = vunpack.c.l.b16 %v1777
    %v1885 = vunpack.c.h.b16 %v1777
    %v1886 = vpack.c.b16 %v1824, %v1822
    %v1887 = vpack.c.b16 %v1825, %v1823
    %v1888 = vpack.c.b16 %v1828, %v1826
    %v1889 = vpack.c.b16 %v1829, %v1827
    %v1890 = vpack.c.b16 %v1832, %v1830
    %v1891 = vpack.c.b16 %v1833, %v1831
    %v1892 = vpack.c.b16 %v1836, %v1834
    %v1893 = vpack.c.b16 %v1837, %v1835
    %v1894 = vpack.c.b16 %v1840, %v1838
    %v1895 = vpack.c.b16 %v1841, %v1839
    %v1896 = vpack.c.b16 %v1844, %v1842
    %v1897 = vpack.c.b16 %v1845, %v1843
    %v1898 = vpack.c.b16 %v1848, %v1846
    %v1899 = vpack.c.b16 %v1849, %v1847
    %v1900 = vpack.c.b16 %v1852, %v1850
    %v1901 = vpack.c.b16 %v1853, %v1851
    %v1902 = vpack.c.b16 %v1856, %v1854
    %v1903 = vpack.c.b16 %v1857, %v1855
    %v1904 = vpack.c.b16 %v1860, %v1858
    %v1905 = vpack.c.b16 %v1861, %v1859
    %v1906 = vpack.c.b16 %v1864, %v1862
    %v1907 = vpack.c.b16 %v1865, %v1863
    %v1908 = vpack.c.b16 %v1868, %v1866
    %v1909 = vpack.c.b16 %v1869, %v1867
    %v1910 = vpack.c.b16 %v1872, %v1870
    %v1911 = vpack.c.b16 %v1873, %v1871
    %v1912 = vpack.c.b16 %v1876, %v1874
    %v1913 = vpack.c.b16 %v1877, %v1875
    %v1914 = vpack.c.b16 %v1880, %v1878
    %v1915 = vpack.c.b16 %v1881, %v1879
    %v1916 = vpack.c.b16 %v1884, %v1882
    %v1917 = vpack.c.b16 %v1885, %v1883
    %1950 = vmatprep.subr.bf16.mxu0 %v1887
    %1951 = vmatpush1.bf16.msra.mxu0 %v1886
    %1952 = vmatprep.subr.bf16.mxu0 %v1889
    %1953 = vmatpush1.bf16.msra.mxu0 %v1888
    %1954 = vmatprep.subr.bf16.mxu0 %v1891
    %1955 = vmatpush1.bf16.msra.mxu0 %v1890
    %1956 = vmatprep.subr.bf16.mxu0 %v1893
    %1957 = vmatpush1.bf16.msra.mxu0 %v1892
    %1958 = vmatprep.subr.bf16.mxu0 %v1895
    %1959 = vmatpush1.bf16.msra.mxu0 %v1894
    %1960 = vmatprep.subr.bf16.mxu0 %v1897
    %1961 = vmatpush1.bf16.msra.mxu0 %v1896
    %1962 = vmatprep.subr.bf16.mxu0 %v1899
    %1963 = vmatpush1.bf16.msra.mxu0 %v1898
    %1964 = vmatprep.subr.bf16.mxu0 %v1901
    %1965 = vmatpush1.bf16.msra.mxu0 %v1900
    %1966 = vmatprep.subr.bf16.mxu0 %v1903
    %1967 = vmatpush1.bf16.msra.mxu0 %v1902
    %1968 = vmatprep.subr.bf16.mxu0 %v1905
    %1969 = vmatpush1.bf16.msra.mxu0 %v1904
    %1970 = vmatprep.subr.bf16.mxu0 %v1907
    %1971 = vmatpush1.bf16.msra.mxu0 %v1906
    %1972 = vmatprep.subr.bf16.mxu0 %v1909
    %1973 = vmatpush1.bf16.msra.mxu0 %v1908
    %1974 = vmatprep.subr.bf16.mxu0 %v1911
    %1975 = vmatpush1.bf16.msra.mxu0 %v1910
    %1976 = vmatprep.subr.bf16.mxu0 %v1913
    %1977 = vmatpush1.bf16.msra.mxu0 %v1912
    %1978 = vmatprep.subr.bf16.mxu0 %v1915
    %1979 = vmatpush1.bf16.msra.mxu0 %v1914
    %1980 = vmatprep.subr.bf16.mxu0 %v1917
    %1981 = vmatpush1.bf16.msra.mxu0 %v1916
    %1982 = vmatprep.mubr.bf16.mxu0 %v1715
    %1983 = vmatmul.mubr.bf16.gmra.mrb[0].mxu0 %v1714
    %v1984 = vpop.f32.mrb[0].mxu0
    %v1985 = vadd.f32 %v1783, %v1984
    %v1986 = vpop.f32.mrb[0].mxu0
    %v1987 = vadd.f32 %v1787, %v1986
    %v1988 = vpop.f32.mrb[0].mxu0
    %v1989 = vadd.f32 %v1783, %v1988
    %v1990 = vpop.f32.mrb[0].mxu0
    %v1991 = vadd.f32 %v1787, %v1990
    %1992 = vmatprep.mubr.bf16.mxu0 %v1717
    %1993 = vmatmul.mubr.bf16.gmra.mrb[0].mxu0 %v1716
    %v1994 = vpop.f32.mrb[0].mxu0
    %v1995 = vadd.f32 %v1783, %v1994
    %v1996 = vpop.f32.mrb[0].mxu0
    %v1997 = vadd.f32 %v1787, %v1996
    %v1998 = vpop.f32.mrb[0].mxu0
    %v1999 = vadd.f32 %v1783, %v1998
    %v2000 = vpop.f32.mrb[0].mxu0
    %v2001 = vadd.f32 %v1787, %v2000
    %2002 = vmatprep.mubr.bf16.mxu0 %v1719
    %2003 = vmatmul.mubr.bf16.gmra.mrb[0].mxu0 %v1718
    %v2004 = vpop.f32.mrb[0].mxu0
    %v2005 = vadd.f32 %v1783, %v2004
    %v2006 = vpop.f32.mrb[0].mxu0
    %v2007 = vadd.f32 %v1787, %v2006
    %v2008 = vpop.f32.mrb[0].mxu0
    %v2009 = vadd.f32 %v1783, %v2008
    %v2010 = vpop.f32.mrb[0].mxu0
    %v2011 = vadd.f32 %v1787, %v2010
    %2012 = vmatprep.mubr.bf16.mxu0 %v1721
    %2013 = vmatmul.mubr.bf16.gmra.mrb[0].mxu0 %v1720
    %v2014 = vpop.f32.mrb[0].mxu0
    %v2015 = vadd.f32 %v1783, %v2014
    %v2016 = vpop.f32.mrb[0].mxu0
    %v2017 = vadd.f32 %v1787, %v2016
    %v2018 = vpop.f32.mrb[0].mxu0
    %v2019 = vadd.f32 %v1783, %v2018
    %v2020 = vpop.f32.mrb[0].mxu0
    %v2021 = vadd.f32 %v1787, %v2020
    %2022 = vmatprep.mubr.bf16.mxu0 %v1723
    %2023 = vmatmul.mubr.bf16.gmra.mrb[0].mxu0 %v1722
    %v2024 = vpop.f32.mrb[0].mxu0
    %v2025 = vadd.f32 %v1783, %v2024
    %v2026 = vpop.f32.mrb[0].mxu0
    %v2027 = vadd.f32 %v1787, %v2026
    %v2028 = vpop.f32.mrb[0].mxu0
    %v2029 = vadd.f32 %v1783, %v2028
    %v2030 = vpop.f32.mrb[0].mxu0
    %v2031 = vadd.f32 %v1787, %v2030
    %2032 = vmatprep.mubr.bf16.mxu0 %v1725
    %2033 = vmatmul.mubr.bf16.gmra.mrb[0].mxu0 %v1724
    %v2034 = vpop.f32.mrb[0].mxu0
    %v2035 = vadd.f32 %v1783, %v2034
    %v2036 = vpop.f32.mrb[0].mxu0
    %v2037 = vadd.f32 %v1787, %v2036
    %v2038 = vpop.f32.mrb[0].mxu0
    %v2039 = vadd.f32 %v1783, %v2038
    %v2040 = vpop.f32.mrb[0].mxu0
    %v2041 = vadd.f32 %v1787, %v2040
    %2042 = vmatprep.mubr.bf16.mxu0 %v1727
    %2043 = vmatmul.mubr.bf16.gmra.mrb[0].mxu0 %v1726
    %v2044 = vpop.f32.mrb[0].mxu0
    %v2045 = vadd.f32 %v1783, %v2044
    %v2046 = vpop.f32.mrb[0].mxu0
    %v2047 = vadd.f32 %v1787, %v2046
    %v2048 = vpop.f32.mrb[0].mxu0
    %v2049 = vadd.f32 %v1783, %v2048
    %v2050 = vpop.f32.mrb[0].mxu0
    %v2051 = vadd.f32 %v1787, %v2050
    %2052 = vmatprep.mubr.bf16.mxu0 %v1729
    %2053 = vmatmul.mubr.bf16.gmra.mrb[0].mxu0 %v1728
    %v2054 = vpop.f32.mrb[0].mxu0
    %v2055 = vadd.f32 %v1783, %v2054
    %v2056 = vpop.f32.mrb[0].mxu0
    %v2057 = vadd.f32 %v1787, %v2056
    %v2058 = vpop.f32.mrb[0].mxu0
    %v2059 = vadd.f32 %v1783, %v2058
    %v2060 = vpop.f32.mrb[0].mxu0
    %v2061 = vadd.f32 %v1787, %v2060
    %2062 = vmatprep.mubr.bf16.mxu0 %v1731
    %2063 = vmatmul.mubr.bf16.gmra.mrb[0].mxu0 %v1730
    %v2064 = vpop.f32.mrb[0].mxu0
    %v2065 = vadd.f32 %v1783, %v2064
    %v2066 = vpop.f32.mrb[0].mxu0
    %v2067 = vadd.f32 %v1787, %v2066
    %v2068 = vpop.f32.mrb[0].mxu0
    %v2069 = vadd.f32 %v1783, %v2068
    %v2070 = vpop.f32.mrb[0].mxu0
    %v2071 = vadd.f32 %v1787, %v2070
    %2072 = vmatprep.mubr.bf16.mxu0 %v1733
    %2073 = vmatmul.mubr.bf16.gmra.mrb[0].mxu0 %v1732
    %v2074 = vpop.f32.mrb[0].mxu0
    %v2075 = vadd.f32 %v1783, %v2074
    %v2076 = vpop.f32.mrb[0].mxu0
    %v2077 = vadd.f32 %v1787, %v2076
    %v2078 = vpop.f32.mrb[0].mxu0
    %v2079 = vadd.f32 %v1783, %v2078
    %v2080 = vpop.f32.mrb[0].mxu0
    %v2081 = vadd.f32 %v1787, %v2080
    %2082 = vmatprep.mubr.bf16.mxu0 %v1735
    %2083 = vmatmul.mubr.bf16.gmra.mrb[0].mxu0 %v1734
    %v2084 = vpop.f32.mrb[0].mxu0
    %v2085 = vadd.f32 %v1783, %v2084
    %v2086 = vpop.f32.mrb[0].mxu0
    %v2087 = vadd.f32 %v1787, %v2086
    %v2088 = vpop.f32.mrb[0].mxu0
    %v2089 = vadd.f32 %v1783, %v2088
    %v2090 = vpop.f32.mrb[0].mxu0
    %v2091 = vadd.f32 %v1787, %v2090
    %2092 = vmatprep.mubr.bf16.mxu0 %v1737
    %2093 = vmatmul.mubr.bf16.gmra.mrb[0].mxu0 %v1736
    %v2094 = vpop.f32.mrb[0].mxu0
    %v2095 = vadd.f32 %v1783, %v2094
    %v2096 = vpop.f32.mrb[0].mxu0
    %v2097 = vadd.f32 %v1787, %v2096
    %v2098 = vpop.f32.mrb[0].mxu0
    %v2099 = vadd.f32 %v1783, %v2098
    %v2100 = vpop.f32.mrb[0].mxu0
    %v2101 = vadd.f32 %v1787, %v2100
    %2102 = vmatprep.mubr.bf16.mxu0 %v1739
    %2103 = vmatmul.mubr.bf16.gmra.mrb[0].mxu0 %v1738
    %v2104 = vpop.f32.mrb[0].mxu0
    %v2105 = vadd.f32 %v1783, %v2104
    %v2106 = vpop.f32.mrb[0].mxu0
    %v2107 = vadd.f32 %v1787, %v2106
    %v2108 = vpop.f32.mrb[0].mxu0
    %v2109 = vadd.f32 %v1783, %v2108
    %v2110 = vpop.f32.mrb[0].mxu0
    %v2111 = vadd.f32 %v1787, %v2110
    %2112 = vmatprep.mubr.bf16.mxu0 %v1741
    %2113 = vmatmul.mubr.bf16.gmra.mrb[0].mxu0 %v1740
    %v2114 = vpop.f32.mrb[0].mxu0
    %v2115 = vadd.f32 %v1783, %v2114
    %v2116 = vpop.f32.mrb[0].mxu0
    %v2117 = vadd.f32 %v1787, %v2116
    %v2118 = vpop.f32.mrb[0].mxu0
    %v2119 = vadd.f32 %v1783, %v2118
    %v2120 = vpop.f32.mrb[0].mxu0
    %v2121 = vadd.f32 %v1787, %v2120
    %2122 = vmatprep.mubr.bf16.mxu0 %v1743
    %2123 = vmatmul.mubr.bf16.gmra.mrb[0].mxu0 %v1742
    %v2124 = vpop.f32.mrb[0].mxu0
    %v2125 = vadd.f32 %v1783, %v2124
    %v2126 = vpop.f32.mrb[0].mxu0
    %v2127 = vadd.f32 %v1787, %v2126
    %v2128 = vpop.f32.mrb[0].mxu0
    %v2129 = vadd.f32 %v1783, %v2128
    %v2130 = vpop.f32.mrb[0].mxu0
    %v2131 = vadd.f32 %v1787, %v2130
    %2132 = vmatprep.mubr.bf16.mxu0 %v1745
    %2133 = vmatmul.mubr.bf16.gmra.mrb[0].mxu0 %v1744
    %v2134 = vpop.f32.mrb[0].mxu0
    %v2135 = vadd.f32 %v1783, %v2134
    %v2136 = vpop.f32.mrb[0].mxu0
    %v2137 = vadd.f32 %v1787, %v2136
    %v2138 = vpop.f32.mrb[0].mxu0
    %v2139 = vadd.f32 %v1783, %v2138
    %v2140 = vpop.f32.mrb[0].mxu0
    %v2141 = vadd.f32 %v1787, %v2140
    %2142 = vdwg.mxu0
    %v2143 = vpack.c.bf16 %v1989, %v1985
    %v2144 = vpack.c.bf16 %v1991, %v1987
    %v2145 = vpack.c.bf16 %v1999, %v1995
    %v2146 = vpack.c.bf16 %v2001, %v1997
    %v2147 = vpack.c.bf16 %v2009, %v2005
    %v2148 = vpack.c.bf16 %v2011, %v2007
    %v2149 = vpack.c.bf16 %v2019, %v2015
    %v2150 = vpack.c.bf16 %v2021, %v2017
    %v2151 = vpack.c.bf16 %v2029, %v2025
    %v2152 = vpack.c.bf16 %v2031, %v2027
    %v2153 = vpack.c.bf16 %v2039, %v2035
    %v2154 = vpack.c.bf16 %v2041, %v2037
    %v2155 = vpack.c.bf16 %v2049, %v2045
    %v2156 = vpack.c.bf16 %v2051, %v2047
    %v2157 = vpack.c.bf16 %v2059, %v2055
    %v2158 = vpack.c.bf16 %v2061, %v2057
    %v2159 = vpack.c.bf16 %v2069, %v2065
    %v2160 = vpack.c.bf16 %v2071, %v2067
    %v2161 = vpack.c.bf16 %v2079, %v2075
    %v2162 = vpack.c.bf16 %v2081, %v2077
    %v2163 = vpack.c.bf16 %v2089, %v2085
    %v2164 = vpack.c.bf16 %v2091, %v2087
    %v2165 = vpack.c.bf16 %v2099, %v2095
    %v2166 = vpack.c.bf16 %v2101, %v2097
    %v2167 = vpack.c.bf16 %v2109, %v2105
    %v2168 = vpack.c.bf16 %v2111, %v2107
    %v2169 = vpack.c.bf16 %v2119, %v2115
    %v2170 = vpack.c.bf16 %v2121, %v2117
    %v2171 = vpack.c.bf16 %v2129, %v2125
    %v2172 = vpack.c.bf16 %v2131, %v2127
    %v2173 = vpack.c.bf16 %v2139, %v2135
    %v2174 = vpack.c.bf16 %v2141, %v2137
    %v2175 = vld [vmem:[#allocation6] sm:$0xff]
    %v2176 = vld [vmem:[#allocation6 + $0x8] sm:$0xff]
    %v2177 = vld [vmem:[#allocation6 + $0x10] sm:$0xff]
    %v2178 = vld [vmem:[#allocation6 + $0x18] sm:$0xff]
    %v2179 = vld [vmem:[#allocation6 + $0x20] sm:$0xff]
    %v2180 = vld [vmem:[#allocation6 + $0x28] sm:$0xff]
    %v2181 = vld [vmem:[#allocation6 + $0x30] sm:$0xff]
    %v2182 = vld [vmem:[#allocation6 + $0x38] sm:$0xff]
    %v2183 = vld [vmem:[#allocation6 + $0x40] sm:$0xff]
    %v2184 = vld [vmem:[#allocation6 + $0x48] sm:$0xff]
    %v2185 = vld [vmem:[#allocation6 + $0x50] sm:$0xff]
    %v2186 = vld [vmem:[#allocation6 + $0x58] sm:$0xff]
    %v2187 = vld [vmem:[#allocation6 + $0x60] sm:$0xff]
    %v2188 = vld [vmem:[#allocation6 + $0x68] sm:$0xff]
    %v2189 = vld [vmem:[#allocation6 + $0x70] sm:$0xff]
    %v2190 = vld [vmem:[#allocation6 + $0x78] sm:$0xff]
    %v2191 = vld [vmem:[#allocation6 + $0x80] sm:$0xff]
    %v2192 = vld [vmem:[#allocation6 + $0x88] sm:$0xff]
    %v2193 = vld [vmem:[#allocation6 + $0x90] sm:$0xff]
    %v2194 = vld [vmem:[#allocation6 + $0x98] sm:$0xff]
    %v2195 = vld [vmem:[#allocation6 + $0xa0] sm:$0xff]
    %v2196 = vld [vmem:[#allocation6 + $0xa8] sm:$0xff]
    %v2197 = vld [vmem:[#allocation6 + $0xb0] sm:$0xff]
    %v2198 = vld [vmem:[#allocation6 + $0xb8] sm:$0xff]
    %v2199 = vld [vmem:[#allocation6 + $0xc0] sm:$0xff]
    %v2200 = vld [vmem:[#allocation6 + $0xc8] sm:$0xff]
    %v2201 = vld [vmem:[#allocation6 + $0xd0] sm:$0xff]
    %v2202 = vld [vmem:[#allocation6 + $0xd8] sm:$0xff]
    %v2203 = vld [vmem:[#allocation6 + $0xe0] sm:$0xff]
    %v2204 = vld [vmem:[#allocation6 + $0xe8] sm:$0xff]
    %v2205 = vld [vmem:[#allocation6 + $0xf0] sm:$0xff]
    %v2206 = vld [vmem:[#allocation6 + $0xf8] sm:$0xff]
    %v2207 = vld [vmem:[%s8] sm:$0x3]
    %v2209 = vlaneseq
    %v2210 = vshrl.u32 %v2209, 7
    %v2211 = vsub.s32 0, %v2210
    %v2212 = vrot.slane %v2207, %v2211
    %v2213 = vlaneseq
    %v2214 = vshrl.u32 %v2213, 7
    %v2215 = vsub.s32 1, %v2214
    %v2216 = vrot.slane %v2207, %v2215
    %v2251 = vunpack.c.l.b16 %v2175
    %v2252 = vunpack.c.h.b16 %v2175
    %v2253 = vunpack.c.l.b16 %v2176
    %v2254 = vunpack.c.h.b16 %v2176
    %v2255 = vunpack.c.l.b16 %v2177
    %v2256 = vunpack.c.h.b16 %v2177
    %v2257 = vunpack.c.l.b16 %v2178
    %v2258 = vunpack.c.h.b16 %v2178
    %v2259 = vunpack.c.l.b16 %v2179
    %v2260 = vunpack.c.h.b16 %v2179
    %v2261 = vunpack.c.l.b16 %v2180
    %v2262 = vunpack.c.h.b16 %v2180
    %v2263 = vunpack.c.l.b16 %v2181
    %v2264 = vunpack.c.h.b16 %v2181
    %v2265 = vunpack.c.l.b16 %v2182
    %v2266 = vunpack.c.h.b16 %v2182
    %v2267 = vunpack.c.l.b16 %v2183
    %v2268 = vunpack.c.h.b16 %v2183
    %v2269 = vunpack.c.l.b16 %v2184
    %v2270 = vunpack.c.h.b16 %v2184
    %v2271 = vunpack.c.l.b16 %v2185
    %v2272 = vunpack.c.h.b16 %v2185
    %v2273 = vunpack.c.l.b16 %v2186
    %v2274 = vunpack.c.h.b16 %v2186
    %v2275 = vunpack.c.l.b16 %v2187
    %v2276 = vunpack.c.h.b16 %v2187
    %v2277 = vunpack.c.l.b16 %v2188
    %v2278 = vunpack.c.h.b16 %v2188
    %v2279 = vunpack.c.l.b16 %v2189
    %v2280 = vunpack.c.h.b16 %v2189
    %v2281 = vunpack.c.l.b16 %v2190
    %v2282 = vunpack.c.h.b16 %v2190
    %v2283 = vunpack.c.l.b16 %v2191
    %v2284 = vunpack.c.h.b16 %v2191
    %v2285 = vunpack.c.l.b16 %v2192
    %v2286 = vunpack.c.h.b16 %v2192
    %v2287 = vunpack.c.l.b16 %v2193
    %v2288 = vunpack.c.h.b16 %v2193
    %v2289 = vunpack.c.l.b16 %v2194
    %v2290 = vunpack.c.h.b16 %v2194
    %v2291 = vunpack.c.l.b16 %v2195
    %v2292 = vunpack.c.h.b16 %v2195
    %v2293 = vunpack.c.l.b16 %v2196
    %v2294 = vunpack.c.h.b16 %v2196
    %v2295 = vunpack.c.l.b16 %v2197
    %v2296 = vunpack.c.h.b16 %v2197
    %v2297 = vunpack.c.l.b16 %v2198
    %v2298 = vunpack.c.h.b16 %v2198
    %v2299 = vunpack.c.l.b16 %v2199
    %v2300 = vunpack.c.h.b16 %v2199
    %v2301 = vunpack.c.l.b16 %v2200
    %v2302 = vunpack.c.h.b16 %v2200
    %v2303 = vunpack.c.l.b16 %v2201
    %v2304 = vunpack.c.h.b16 %v2201
    %v2305 = vunpack.c.l.b16 %v2202
    %v2306 = vunpack.c.h.b16 %v2202
    %v2307 = vunpack.c.l.b16 %v2203
    %v2308 = vunpack.c.h.b16 %v2203
    %v2309 = vunpack.c.l.b16 %v2204
    %v2310 = vunpack.c.h.b16 %v2204
    %v2311 = vunpack.c.l.b16 %v2205
    %v2312 = vunpack.c.h.b16 %v2205
    %v2313 = vunpack.c.l.b16 %v2206
    %v2314 = vunpack.c.h.b16 %v2206
    %v2315 = vpack.c.b16 %v2253, %v2251
    %v2316 = vpack.c.b16 %v2254, %v2252
    %v2317 = vpack.c.b16 %v2257, %v2255
    %v2318 = vpack.c.b16 %v2258, %v2256
    %v2319 = vpack.c.b16 %v2261, %v2259
    %v2320 = vpack.c.b16 %v2262, %v2260
    %v2321 = vpack.c.b16 %v2265, %v2263
    %v2322 = vpack.c.b16 %v2266, %v2264
    %v2323 = vpack.c.b16 %v2269, %v2267
    %v2324 = vpack.c.b16 %v2270, %v2268
    %v2325 = vpack.c.b16 %v2273, %v2271
    %v2326 = vpack.c.b16 %v2274, %v2272
    %v2327 = vpack.c.b16 %v2277, %v2275
    %v2328 = vpack.c.b16 %v2278, %v2276
    %v2329 = vpack.c.b16 %v2281, %v2279
    %v2330 = vpack.c.b16 %v2282, %v2280
    %v2331 = vpack.c.b16 %v2285, %v2283
    %v2332 = vpack.c.b16 %v2286, %v2284
    %v2333 = vpack.c.b16 %v2289, %v2287
    %v2334 = vpack.c.b16 %v2290, %v2288
    %v2335 = vpack.c.b16 %v2293, %v2291
    %v2336 = vpack.c.b16 %v2294, %v2292
    %v2337 = vpack.c.b16 %v2297, %v2295
    %v2338 = vpack.c.b16 %v2298, %v2296
    %v2339 = vpack.c.b16 %v2301, %v2299
    %v2340 = vpack.c.b16 %v2302, %v2300
    %v2341 = vpack.c.b16 %v2305, %v2303
    %v2342 = vpack.c.b16 %v2306, %v2304
    %v2343 = vpack.c.b16 %v2309, %v2307
    %v2344 = vpack.c.b16 %v2310, %v2308
    %v2345 = vpack.c.b16 %v2313, %v2311
    %v2346 = vpack.c.b16 %v2314, %v2312
    %2379 = vmatprep.subr.bf16.mxu0 %v2316
    %2380 = vmatpush1.bf16.msra.mxu0 %v2315
    %2381 = vmatprep.subr.bf16.mxu0 %v2318
    %2382 = vmatpush1.bf16.msra.mxu0 %v2317
    %2383 = vmatprep.subr.bf16.mxu0 %v2320
    %2384 = vmatpush1.bf16.msra.mxu0 %v2319
    %2385 = vmatprep.subr.bf16.mxu0 %v2322
    %2386 = vmatpush1.bf16.msra.mxu0 %v2321
    %2387 = vmatprep.subr.bf16.mxu0 %v2324
    %2388 = vmatpush1.bf16.msra.mxu0 %v2323
    %2389 = vmatprep.subr.bf16.mxu0 %v2326
    %2390 = vmatpush1.bf16.msra.mxu0 %v2325
    %2391 = vmatprep.subr.bf16.mxu0 %v2328
    %2392 = vmatpush1.bf16.msra.mxu0 %v2327
    %2393 = vmatprep.subr.bf16.mxu0 %v2330
    %2394 = vmatpush1.bf16.msra.mxu0 %v2329
    %2395 = vmatprep.subr.bf16.mxu0 %v2332
    %2396 = vmatpush1.bf16.msra.mxu0 %v2331
    %2397 = vmatprep.subr.bf16.mxu0 %v2334
    %2398 = vmatpush1.bf16.msra.mxu0 %v2333
    %2399 = vmatprep.subr.bf16.mxu0 %v2336
    %2400 = vmatpush1.bf16.msra.mxu0 %v2335
    %2401 = vmatprep.subr.bf16.mxu0 %v2338
    %2402 = vmatpush1.bf16.msra.mxu0 %v2337
    %2403 = vmatprep.subr.bf16.mxu0 %v2340
    %2404 = vmatpush1.bf16.msra.mxu0 %v2339
    %2405 = vmatprep.subr.bf16.mxu0 %v2342
    %2406 = vmatpush1.bf16.msra.mxu0 %v2341
    %2407 = vmatprep.subr.bf16.mxu0 %v2344
    %2408 = vmatpush1.bf16.msra.mxu0 %v2343
    %2409 = vmatprep.subr.bf16.mxu0 %v2346
    %2410 = vmatpush1.bf16.msra.mxu0 %v2345
    %2411 = vmatprep.mubr.bf16.mxu0 %v2144
    %2412 = vmatmul.mubr.bf16.gmra.mrb[0].mxu0 %v2143
    %v2413 = vpop.f32.mrb[0].mxu0
    %v2414 = vadd.f32 %v2212, %v2413
    %v2415 = vpop.f32.mrb[0].mxu0
    %v2416 = vadd.f32 %v2216, %v2415
    %v2417 = vpop.f32.mrb[0].mxu0
    %v2418 = vadd.f32 %v2212, %v2417
    %v2419 = vpop.f32.mrb[0].mxu0
    %v2420 = vadd.f32 %v2216, %v2419
    %2421 = vmatprep.mubr.bf16.mxu0 %v2146
    %2422 = vmatmul.mubr.bf16.gmra.mrb[0].mxu0 %v2145
    %v2423 = vpop.f32.mrb[0].mxu0
    %v2424 = vadd.f32 %v2212, %v2423
    %v2425 = vpop.f32.mrb[0].mxu0
    %v2426 = vadd.f32 %v2216, %v2425
    %v2427 = vpop.f32.mrb[0].mxu0
    %v2428 = vadd.f32 %v2212, %v2427
    %v2429 = vpop.f32.mrb[0].mxu0
    %v2430 = vadd.f32 %v2216, %v2429
    %2431 = vmatprep.mubr.bf16.mxu0 %v2148
    %2432 = vmatmul.mubr.bf16.gmra.mrb[0].mxu0 %v2147
    %v2433 = vpop.f32.mrb[0].mxu0
    %v2434 = vadd.f32 %v2212, %v2433
    %v2435 = vpop.f32.mrb[0].mxu0
    %v2436 = vadd.f32 %v2216, %v2435
    %v2437 = vpop.f32.mrb[0].mxu0
    %v2438 = vadd.f32 %v2212, %v2437
    %v2439 = vpop.f32.mrb[0].mxu0
    %v2440 = vadd.f32 %v2216, %v2439
    %2441 = vmatprep.mubr.bf16.mxu0 %v2150
    %2442 = vmatmul.mubr.bf16.gmra.mrb[0].mxu0 %v2149
    %v2443 = vpop.f32.mrb[0].mxu0
    %v2444 = vadd.f32 %v2212, %v2443
    %v2445 = vpop.f32.mrb[0].mxu0
    %v2446 = vadd.f32 %v2216, %v2445
    %v2447 = vpop.f32.mrb[0].mxu0
    %v2448 = vadd.f32 %v2212, %v2447
    %v2449 = vpop.f32.mrb[0].mxu0
    %v2450 = vadd.f32 %v2216, %v2449
    %2451 = vmatprep.mubr.bf16.mxu0 %v2152
    %2452 = vmatmul.mubr.bf16.gmra.mrb[0].mxu0 %v2151
    %v2453 = vpop.f32.mrb[0].mxu0
    %v2454 = vadd.f32 %v2212, %v2453
    %v2455 = vpop.f32.mrb[0].mxu0
    %v2456 = vadd.f32 %v2216, %v2455
    %v2457 = vpop.f32.mrb[0].mxu0
    %v2458 = vadd.f32 %v2212, %v2457
    %v2459 = vpop.f32.mrb[0].mxu0
    %v2460 = vadd.f32 %v2216, %v2459
    %2461 = vmatprep.mubr.bf16.mxu0 %v2154
    %2462 = vmatmul.mubr.bf16.gmra.mrb[0].mxu0 %v2153
    %v2463 = vpop.f32.mrb[0].mxu0
    %v2464 = vadd.f32 %v2212, %v2463
    %v2465 = vpop.f32.mrb[0].mxu0
    %v2466 = vadd.f32 %v2216, %v2465
    %v2467 = vpop.f32.mrb[0].mxu0
    %v2468 = vadd.f32 %v2212, %v2467
    %v2469 = vpop.f32.mrb[0].mxu0
    %v2470 = vadd.f32 %v2216, %v2469
    %2471 = vmatprep.mubr.bf16.mxu0 %v2156
    %2472 = vmatmul.mubr.bf16.gmra.mrb[0].mxu0 %v2155
    %v2473 = vpop.f32.mrb[0].mxu0
    %v2474 = vadd.f32 %v2212, %v2473
    %v2475 = vpop.f32.mrb[0].mxu0
    %v2476 = vadd.f32 %v2216, %v2475
    %v2477 = vpop.f32.mrb[0].mxu0
    %v2478 = vadd.f32 %v2212, %v2477
    %v2479 = vpop.f32.mrb[0].mxu0
    %v2480 = vadd.f32 %v2216, %v2479
    %2481 = vmatprep.mubr.bf16.mxu0 %v2158
    %2482 = vmatmul.mubr.bf16.gmra.mrb[0].mxu0 %v2157
    %v2483 = vpop.f32.mrb[0].mxu0
    %v2484 = vadd.f32 %v2212, %v2483
    %v2485 = vpop.f32.mrb[0].mxu0
    %v2486 = vadd.f32 %v2216, %v2485
    %v2487 = vpop.f32.mrb[0].mxu0
    %v2488 = vadd.f32 %v2212, %v2487
    %v2489 = vpop.f32.mrb[0].mxu0
    %v2490 = vadd.f32 %v2216, %v2489
    %2491 = vmatprep.mubr.bf16.mxu0 %v2160
    %2492 = vmatmul.mubr.bf16.gmra.mrb[0].mxu0 %v2159
    %v2493 = vpop.f32.mrb[0].mxu0
    %v2494 = vadd.f32 %v2212, %v2493
    %v2495 = vpop.f32.mrb[0].mxu0
    %v2496 = vadd.f32 %v2216, %v2495
    %v2497 = vpop.f32.mrb[0].mxu0
    %v2498 = vadd.f32 %v2212, %v2497
    %v2499 = vpop.f32.mrb[0].mxu0
    %v2500 = vadd.f32 %v2216, %v2499
    %2501 = vmatprep.mubr.bf16.mxu0 %v2162
    %2502 = vmatmul.mubr.bf16.gmra.mrb[0].mxu0 %v2161
    %v2503 = vpop.f32.mrb[0].mxu0
    %v2504 = vadd.f32 %v2212, %v2503
    %v2505 = vpop.f32.mrb[0].mxu0
    %v2506 = vadd.f32 %v2216, %v2505
    %v2507 = vpop.f32.mrb[0].mxu0
    %v2508 = vadd.f32 %v2212, %v2507
    %v2509 = vpop.f32.mrb[0].mxu0
    %v2510 = vadd.f32 %v2216, %v2509
    %2511 = vmatprep.mubr.bf16.mxu0 %v2164
    %2512 = vmatmul.mubr.bf16.gmra.mrb[0].mxu0 %v2163
    %v2513 = vpop.f32.mrb[0].mxu0
    %v2514 = vadd.f32 %v2212, %v2513
    %v2515 = vpop.f32.mrb[0].mxu0
    %v2516 = vadd.f32 %v2216, %v2515
    %v2517 = vpop.f32.mrb[0].mxu0
    %v2518 = vadd.f32 %v2212, %v2517
    %v2519 = vpop.f32.mrb[0].mxu0
    %v2520 = vadd.f32 %v2216, %v2519
    %2521 = vmatprep.mubr.bf16.mxu0 %v2166
    %2522 = vmatmul.mubr.bf16.gmra.mrb[0].mxu0 %v2165
    %v2523 = vpop.f32.mrb[0].mxu0
    %v2524 = vadd.f32 %v2212, %v2523
    %v2525 = vpop.f32.mrb[0].mxu0
    %v2526 = vadd.f32 %v2216, %v2525
    %v2527 = vpop.f32.mrb[0].mxu0
    %v2528 = vadd.f32 %v2212, %v2527
    %v2529 = vpop.f32.mrb[0].mxu0
    %v2530 = vadd.f32 %v2216, %v2529
    %2531 = vmatprep.mubr.bf16.mxu0 %v2168
    %2532 = vmatmul.mubr.bf16.gmra.mrb[0].mxu0 %v2167
    %v2533 = vpop.f32.mrb[0].mxu0
    %v2534 = vadd.f32 %v2212, %v2533
    %v2535 = vpop.f32.mrb[0].mxu0
    %v2536 = vadd.f32 %v2216, %v2535
    %v2537 = vpop.f32.mrb[0].mxu0
    %v2538 = vadd.f32 %v2212, %v2537
    %v2539 = vpop.f32.mrb[0].mxu0
    %v2540 = vadd.f32 %v2216, %v2539
    %2541 = vmatprep.mubr.bf16.mxu0 %v2170
    %2542 = vmatmul.mubr.bf16.gmra.mrb[0].mxu0 %v2169
    %v2543 = vpop.f32.mrb[0].mxu0
    %v2544 = vadd.f32 %v2212, %v2543
    %v2545 = vpop.f32.mrb[0].mxu0
    %v2546 = vadd.f32 %v2216, %v2545
    %v2547 = vpop.f32.mrb[0].mxu0
    %v2548 = vadd.f32 %v2212, %v2547
    %v2549 = vpop.f32.mrb[0].mxu0
    %v2550 = vadd.f32 %v2216, %v2549
    %2551 = vmatprep.mubr.bf16.mxu0 %v2172
    %2552 = vmatmul.mubr.bf16.gmra.mrb[0].mxu0 %v2171
    %v2553 = vpop.f32.mrb[0].mxu0
    %v2554 = vadd.f32 %v2212, %v2553
    %v2555 = vpop.f32.mrb[0].mxu0
    %v2556 = vadd.f32 %v2216, %v2555
    %v2557 = vpop.f32.mrb[0].mxu0
    %v2558 = vadd.f32 %v2212, %v2557
    %v2559 = vpop.f32.mrb[0].mxu0
    %v2560 = vadd.f32 %v2216, %v2559
    %2561 = vmatprep.mubr.bf16.mxu0 %v2174
    %2562 = vmatmul.mubr.bf16.gmra.mrb[0].mxu0 %v2173
    %v2563 = vpop.f32.mrb[0].mxu0
    %v2564 = vadd.f32 %v2212, %v2563
    %v2565 = vpop.f32.mrb[0].mxu0
    %v2566 = vadd.f32 %v2216, %v2565
    %v2567 = vpop.f32.mrb[0].mxu0
    %v2568 = vadd.f32 %v2212, %v2567
    %v2569 = vpop.f32.mrb[0].mxu0
    %v2570 = vadd.f32 %v2216, %v2569
    %2571 = vdwg.mxu0
    %v2572 = vld [vmem:[%s9] sm:$0xff]
    %v2573 = vpack.c.bf16 %v2418, %v2414
    %v2574 = vpack.c.bf16 %v2420, %v2416
    %v2575 = vpack.c.bf16 %v2428, %v2424
    %v2576 = vpack.c.bf16 %v2430, %v2426
    %v2577 = vpack.c.bf16 %v2438, %v2434
    %v2578 = vpack.c.bf16 %v2440, %v2436
    %v2579 = vpack.c.bf16 %v2448, %v2444
    %v2580 = vpack.c.bf16 %v2450, %v2446
    %v2581 = vpack.c.bf16 %v2458, %v2454
    %v2582 = vpack.c.bf16 %v2460, %v2456
    %v2583 = vpack.c.bf16 %v2468, %v2464
    %v2584 = vpack.c.bf16 %v2470, %v2466
    %v2585 = vpack.c.bf16 %v2478, %v2474
    %v2586 = vpack.c.bf16 %v2480, %v2476
    %v2587 = vpack.c.bf16 %v2488, %v2484
    %v2588 = vpack.c.bf16 %v2490, %v2486
    %v2589 = vpack.c.bf16 %v2498, %v2494
    %v2590 = vpack.c.bf16 %v2500, %v2496
    %v2591 = vpack.c.bf16 %v2508, %v2504
    %v2592 = vpack.c.bf16 %v2510, %v2506
    %v2593 = vpack.c.bf16 %v2518, %v2514
    %v2594 = vpack.c.bf16 %v2520, %v2516
    %v2595 = vpack.c.bf16 %v2528, %v2524
    %v2596 = vpack.c.bf16 %v2530, %v2526
    %v2597 = vpack.c.bf16 %v2538, %v2534
    %v2598 = vpack.c.bf16 %v2540, %v2536
    %v2599 = vpack.c.bf16 %v2548, %v2544
    %v2600 = vpack.c.bf16 %v2550, %v2546
    %v2601 = vpack.c.bf16 %v2558, %v2554
    %v2602 = vpack.c.bf16 %v2560, %v2556
    %v2603 = vpack.c.bf16 %v2568, %v2564
    %v2604 = vpack.c.bf16 %v2570, %v2566
    %v2605 = vld [vmem:[%s10] sm:$0xff]
    %2607 = vset.pattern.permute.xlu0 0
    %2608 = vperm.xlu0 %2607, %v2605
    %v2609 = vpop.permute.xlu0 %2608
    %v2612 = vunpack.c.l.b16 %v2572
    %v2613 = vunpack.c.h.b16 %v2572
    %v2614 = vpack.c.b16 %v2612, %v2612
    %v2615 = vpack.c.b16 %v2613, %v2613
    %2618 = vmatprep.subr.bf16.mxu0 %v2574
    %2619 = vmatpush1.bf16.xpose.msra.mxu0 %v2573
    %2620 = vmatprep.subr.bf16.mxu0 %v2576
    %2621 = vmatpush1.bf16.xpose.msra.mxu0 %v2575
    %2622 = vmatprep.subr.bf16.mxu0 %v2578
    %2623 = vmatpush1.bf16.xpose.msra.mxu0 %v2577
    %2624 = vmatprep.subr.bf16.mxu0 %v2580
    %2625 = vmatpush1.bf16.xpose.msra.mxu0 %v2579
    %2626 = vmatprep.subr.bf16.mxu0 %v2582
    %2627 = vmatpush1.bf16.xpose.msra.mxu0 %v2581
    %2628 = vmatprep.subr.bf16.mxu0 %v2584
    %2629 = vmatpush1.bf16.xpose.msra.mxu0 %v2583
    %2630 = vmatprep.subr.bf16.mxu0 %v2586
    %2631 = vmatpush1.bf16.xpose.msra.mxu0 %v2585
    %2632 = vmatprep.subr.bf16.mxu0 %v2588
    %2633 = vmatpush1.bf16.xpose.msra.mxu0 %v2587
    %2634 = vmatprep.subr.bf16.mxu0 %v2590
    %2635 = vmatpush1.bf16.xpose.msra.mxu0 %v2589
    %2636 = vmatprep.subr.bf16.mxu0 %v2592
    %2637 = vmatpush1.bf16.xpose.msra.mxu0 %v2591
    %2638 = vmatprep.subr.bf16.mxu0 %v2594
    %2639 = vmatpush1.bf16.xpose.msra.mxu0 %v2593
    %2640 = vmatprep.subr.bf16.mxu0 %v2596
    %2641 = vmatpush1.bf16.xpose.msra.mxu0 %v2595
    %2642 = vmatprep.subr.bf16.mxu0 %v2598
    %2643 = vmatpush1.bf16.xpose.msra.mxu0 %v2597
    %2644 = vmatprep.subr.bf16.mxu0 %v2600
    %2645 = vmatpush1.bf16.xpose.msra.mxu0 %v2599
    %2646 = vmatprep.subr.bf16.mxu0 %v2602
    %2647 = vmatpush1.bf16.xpose.msra.mxu0 %v2601
    %2648 = vmatprep.subr.bf16.mxu0 %v2604
    %2649 = vmatpush1.bf16.xpose.msra.mxu0 %v2603
    %2650 = vmatprep.mubr.bf16.mxu0 %v2615
    %2651 = vmatmul.mubr.bf16.gmra.mrb[0].mxu0 %v2614
    %v2652 = vpop.f32.mrb[0].mxu0
    %v2653 = vadd.f32 %v2609, %v2652
    %v2654 = vpop.f32.mrb[0].mxu0
    %v2655 = vadd.f32 %v2609, %v2654
    %v2656 = vpop.f32.mrb[0].mxu0
    %v2657 = vpop.f32.mrb[0].mxu0
    %2658 = vdwg.mxu0
    %2659 = vst [vmem:[%s11] sm:$0xff] %v2653
    %2660 = vst [vmem:[%s11 + $0x8] sm:$0xff] %v2655
    // Predicated region
    $region58: #{lo_net_forward.1} parent=1 // pred_check
      _
    $region59: #{lo_net_forward.1} parent=1 // pred_check_branch
      %2662 = sbr.rel (0) target = $region61
    $region60: #{lo_net_forward.1} parent=1 // pred_region
      _
    $region61: #{lo_net_forward.1} parent=1 // pred_fallthru
      _
    // Predicated region
    $region62: #{lo_net_forward.1} parent=1 // pred_check
      _
    $region63: #{lo_net_forward.1} parent=1 // pred_check_branch
      %2664 = sbr.rel (0) target = $region65
    $region64: #{lo_net_forward.1} parent=1 // pred_region
      _
    $region65: #{lo_net_forward.1} parent=1 // pred_fallthru
      _
    %2665 = vsyncpa [#allocation3], 1
    %2666 = vsyncpa [#allocation5], 1

</llo_original>
